<compile_context>
chip_gen: v7x
topology: tpu7x:2x2x1
jax: 0.10.0
libtpu: 0.0.40
codegen_flags: <defaults>
</compile_context>

<pallas_src>
import functools

import jax
import jax.numpy as jnp
from jax.experimental import pallas as pl
from jax.experimental.pallas import tpu as pltpu

IMAGE_SIZE = 784
HIDDEN = 256
BN_EPS = 1e-5
DROP_P = 0.2

VMEM_LIMIT = 32 * 1024 * 1024          # fits the v7x scoped default as well
FUSE_H_BYTES_CAP = 12 * 1024 * 1024    # f32 h scratch cap for the fused path


def _round_up(n, m):
    return ((n + m - 1) // m) * m


def _dropout_mask(key, rows):
    """Inverted-dropout mask: 0 with prob p, 1/(1-p) otherwise. bf16 (exact)."""
    keep = jax.random.uniform(key, (rows, HIDDEN), jnp.float32) >= DROP_P
    return (keep.astype(jnp.float32) * (1.0 / (1.0 - DROP_P))).astype(jnp.bfloat16)


# ---------------------------------------------------------------------------
# Fused path: grid = (phase, tile).  Phase 0 computes fc1 per batch tile into
# a persistent VMEM scratch and accumulates the per-feature sum / sum-of-
# squares.  Phase 1 applies folded BN + ReLU + dropout + fc2 + sigmoid and
# writes lane-major (1, tile_b) logits.  Everything runs on one core
# (both grid axes "arbitrary") so the scratch state is shared.
# ---------------------------------------------------------------------------
def _fused_kernel(x_ref, w1_ref, b1_ref, gamma_ref, beta_ref, mask_ref,
                  w2_ref, b2_ref, out_ref, h_scr, ssum_scr, ssq_scr,
                  *, batch, tile_b):
    phase = pl.program_id(0)
    i = pl.program_id(1)
    row_start = pl.multiple_of(i * tile_b, 128)

    @pl.when(phase == 0)
    def _():
        @pl.when(i == 0)
        def _():
            ssum_scr[...] = jnp.zeros_like(ssum_scr)
            ssq_scr[...] = jnp.zeros_like(ssq_scr)

        h = jnp.dot(x_ref[...], w1_ref[...],
                    preferred_element_type=jnp.float32) + b1_ref[...]
        h_scr[pl.ds(row_start, tile_b), :] = h

        # Mask out batch-padding rows before accumulating the statistics.
        row = i * tile_b + jax.lax.broadcasted_iota(jnp.int32, (tile_b, 1), 0)
        hm = jnp.where(row < batch, h, 0.0)
        ssum_scr[...] += jnp.sum(hm, axis=0, keepdims=True)
        ssq_scr[...] += jnp.sum(hm * hm, axis=0, keepdims=True)

    @pl.when(phase == 1)
    def _():
        inv_n = 1.0 / float(batch)
        mean = ssum_scr[...] * inv_n                                 # (1, 256)
        var = jnp.maximum(ssq_scr[...] * inv_n - mean * mean, 0.0)   # biased var
        scale = gamma_ref[...] * jax.lax.rsqrt(var + BN_EPS)
        shift = beta_ref[...] - mean * scale

        h = h_scr[pl.ds(row_start, tile_b), :] * scale + shift
        h = jnp.maximum(h, 0.0)                       # ReLU
        h = h * mask_ref[...].astype(jnp.float32)     # dropout (1/(1-p) folded)

        # fc2 directly in lane-major layout: (1,256) @ (256,tile_b) -> (1,tile_b)
        logit = jnp.dot(w2_ref[...], h.T,
                        preferred_element_type=jnp.float32) + b2_ref[...]
        # Explicit formula kept (exact; divide cost is negligible, pass is mem-bound).
        out_ref[...] = 1.0 / (1.0 + jnp.exp(-logit))


# ---------------------------------------------------------------------------
# Two-pass fallback (large batches whose h does not fit the VMEM budget).
# ---------------------------------------------------------------------------
def _fc1_stats_kernel(x_ref, w1_ref, b1_ref, h_ref, ssum_ref, ssq_ref,
                      *, batch, tile_b):
    i = pl.program_id(0)
    h = jnp.dot(x_ref[...], w1_ref[...],
                preferred_element_type=jnp.float32) + b1_ref[...]
    h_ref[...] = h.astype(h_ref.dtype)              # bf16 intermediate

    row = i * tile_b + jax.lax.broadcasted_iota(jnp.int32, (tile_b, 1), 0)
    hm = jnp.where(row < batch, h, 0.0)

    @pl.when(i == 0)
    def _():
        ssum_ref[...] = jnp.zeros_like(ssum_ref)
        ssq_ref[...] = jnp.zeros_like(ssq_ref)

    ssum_ref[...] += jnp.sum(hm, axis=0, keepdims=True)
    ssq_ref[...] += jnp.sum(hm * hm, axis=0, keepdims=True)


def _bn_head_kernel(h_ref, ssum_ref, ssq_ref, gamma_ref, beta_ref, mask_ref,
                    w2_ref, b2_ref, out_ref, *, batch):
    inv_n = 1.0 / float(batch)
    mean = ssum_ref[...] * inv_n
    var = jnp.maximum(ssq_ref[...] * inv_n - mean * mean, 0.0)
    scale = gamma_ref[...] * jax.lax.rsqrt(var + BN_EPS)
    shift = beta_ref[...] - mean * scale

    h = h_ref[...].astype(jnp.float32) * scale + shift
    h = jnp.maximum(h, 0.0)
    h = h * mask_ref[...].astype(jnp.float32)

    logit = jnp.dot(w2_ref[...], h.T,
                    preferred_element_type=jnp.float32) + b2_ref[...]
    out_ref[...] = 1.0 / (1.0 + jnp.exp(-logit))


def discriminator_forward(x, params, dropout_key, *, tile_b=512,
                          force_two_pass=False):
    """x: (B, 784) float32 -> (B, 1) float32 probabilities (training-mode fwd).

    tile_b: batch rows per grid step (rounded to a multiple of 128; default 512
    amortizes the ~0.35us/step overhead while staying a few MiB of VMEM).
    """
    batch, feat = x.shape
    assert feat == IMAGE_SIZE and batch >= 1
    x = x.astype(jnp.float32)

    tile_b = _round_up(max(tile_b, 128), 128)
    tile_b = min(tile_b, _round_up(batch, 128))
    n_tiles = -(-batch // tile_b)        # cdiv: ragged last tile, no x padding
    b_pad = n_tiles * tile_b

    mask = _dropout_mask(dropout_key, batch)        # (batch, 256) bf16
    w1, b1 = params["w1"], params["b1"]
    gamma, beta = params["gamma"], params["beta"]
    w2, b2 = params["w2"], params["b2"]             # torch layout (1,256), (1,1)

    use_fused = (not force_two_pass) and (b_pad * HIDDEN * 4 <= FUSE_H_BYTES_CAP)

    if use_fused:
        out_row = pl.pallas_call(
            functools.partial(_fused_kernel, batch=batch, tile_b=tile_b),
            grid=(2, n_tiles),
            in_specs=[
                pl.BlockSpec((tile_b, IMAGE_SIZE), lambda p, i: (i * (1 - p), 0)),
                pl.BlockSpec((IMAGE_SIZE, HIDDEN), lambda p, i: (0, 0)),
                pl.BlockSpec((1, HIDDEN), lambda p, i: (0, 0)),   # b1
                pl.BlockSpec((1, HIDDEN), lambda p, i: (0, 0)),   # gamma
                pl.BlockSpec((1, HIDDEN), lambda p, i: (0, 0)),   # beta
                pl.BlockSpec((tile_b, HIDDEN), lambda p, i: (i * p, 0)),  # mask
                pl.BlockSpec((1, HIDDEN), lambda p, i: (0, 0)),   # w2
                pl.BlockSpec((1, 1), lambda p, i: (0, 0)),        # b2
            ],
            out_specs=pl.BlockSpec((1, tile_b), lambda p, i: (0, i * p)),
            out_shape=jax.ShapeDtypeStruct((1, b_pad), jnp.float32),
            scratch_shapes=[
                pltpu.VMEM((b_pad, HIDDEN), jnp.float32),   # resident h
                pltpu.VMEM((1, HIDDEN), jnp.float32),       # sum
                pltpu.VMEM((1, HIDDEN), jnp.float32),       # sum of squares
            ],
            compiler_params=pltpu.CompilerParams(
                dimension_semantics=("arbitrary", "arbitrary"),
                vmem_limit_bytes=VMEM_LIMIT),
        )(x, w1, b1, gamma, beta, mask, w2, b2)
    else:
        # Pass 1: fc1 + BN statistics (resident (1,256) accumulators).
        h, ssum, ssq = pl.pallas_call(
            functools.partial(_fc1_stats_kernel, batch=batch, tile_b=tile_b),
            grid=(n_tiles,),
            in_specs=[
                pl.BlockSpec((tile_b, IMAGE_SIZE), lambda i: (i, 0)),
                pl.BlockSpec((IMAGE_SIZE, HIDDEN), lambda i: (0, 0)),
                pl.BlockSpec((1, HIDDEN), lambda i: (0, 0)),
            ],
            out_specs=[
                pl.BlockSpec((tile_b, HIDDEN), lambda i: (i, 0)),
                pl.BlockSpec((1, HIDDEN), lambda i: (0, 0)),
                pl.BlockSpec((1, HIDDEN), lambda i: (0, 0)),
            ],
            out_shape=[
                jax.ShapeDtypeStruct((b_pad, HIDDEN), jnp.bfloat16),
                jax.ShapeDtypeStruct((1, HIDDEN), jnp.float32),
                jax.ShapeDtypeStruct((1, HIDDEN), jnp.float32),
            ],
            compiler_params=pltpu.CompilerParams(
                dimension_semantics=("arbitrary",),
                vmem_limit_bytes=VMEM_LIMIT),
        )(x, w1, b1)

        # Pass 2: folded BN + ReLU + dropout + fc2 + sigmoid (batch-parallel).
        out_row = pl.pallas_call(
            functools.partial(_bn_head_kernel, batch=batch),
            grid=(n_tiles,),
            in_specs=[
                pl.BlockSpec((tile_b, HIDDEN), lambda i: (i, 0)),   # h (bf16)
                pl.BlockSpec((1, HIDDEN), lambda i: (0, 0)),        # sum
                pl.BlockSpec((1, HIDDEN), lambda i: (0, 0)),        # sum sq
                pl.BlockSpec((1, HIDDEN), lambda i: (0, 0)),        # gamma
                pl.BlockSpec((1, HIDDEN), lambda i: (0, 0)),        # beta
                pl.BlockSpec((tile_b, HIDDEN), lambda i: (i, 0)),   # mask (bf16)
                pl.BlockSpec((1, HIDDEN), lambda i: (0, 0)),        # w2
                pl.BlockSpec((1, 1), lambda i: (0, 0)),             # b2
            ],
            out_specs=pl.BlockSpec((1, tile_b), lambda i: (0, i)),
            out_shape=jax.ShapeDtypeStruct((1, b_pad), jnp.float32),
            compiler_params=pltpu.CompilerParams(
                dimension_semantics=("parallel",),
                vmem_limit_bytes=VMEM_LIMIT),
        )(h, ssum, ssq, gamma, beta, mask, w2, b2)

    return out_row[0, :batch].reshape(batch, 1)


def init_params(key):
    """Deterministic init mimicking torch.nn.Linear defaults."""
    k1, k2, k3, k4 = jax.random.split(key, 4)
    lim1 = 1.0 / jnp.sqrt(jnp.float32(IMAGE_SIZE))
    lim2 = 1.0 / jnp.sqrt(jnp.float32(HIDDEN))
    return {
        # w1 stored transposed relative to torch: (in_features, out_features)
        "w1": jax.random.uniform(k1, (IMAGE_SIZE, HIDDEN), jnp.float32, -lim1, lim1),
        "b1": jax.random.uniform(k2, (1, HIDDEN), jnp.float32, -lim1, lim1),
        "gamma": jnp.ones((1, HIDDEN), jnp.float32),
        "beta": jnp.zeros((1, HIDDEN), jnp.float32),
        # w2 in torch layout (out_features, in_features) = (1, 256)
        "w2": jax.random.uniform(k3, (1, HIDDEN), jnp.float32, -lim2, lim2),
        "b2": jax.random.uniform(k4, (1, 1), jnp.float32, -lim2, lim2),
    }


if __name__ == "__main__":
    key = jax.random.PRNGKey(0)
    k_param, k_x, k_drop = jax.random.split(key, 3)

    params = init_params(k_param)
    batch = 200                      # two tiles + a ragged (masked) last tile
    x = jax.random.normal(k_x, (batch, IMAGE_SIZE), dtype=jnp.float32)

    out_fused = jax.block_until_ready(
        discriminator_forward(x, params, k_drop, tile_b=128))
    out_twopass = jax.block_until_ready(
        discriminator_forward(x, params, k_drop, tile_b=128, force_two_pass=True))

    # Pure-JAX reference with the identical (bf16-exact) dropout mask.
    hp = jax.lax.Precision.HIGHEST
    mask = _dropout_mask(k_drop, batch).astype(jnp.float32)
    h = jnp.dot(x, params["w1"], precision=hp) + params["b1"]
    mean = jnp.mean(h, axis=0, keepdims=True)
    var = jnp.mean((h - mean) ** 2, axis=0, keepdims=True)
    h = (h - mean) * jax.lax.rsqrt(var + BN_EPS)
    h = h * params["gamma"] + params["beta"]
    h = jnp.maximum(h, 0.0) * mask
    ref = 1.0 / (1.0 + jnp.exp(-(jnp.dot(h, params["w2"].T, precision=hp)
                                 + params["b2"])))

    for name, out in (("fused", out_fused), ("two_pass", out_twopass)):
        assert out.shape == (batch, 1), (name, out.shape)
        assert bool(jnp.all((out >= 0.0) & (out <= 1.0))), name
        err = float(jnp.max(jnp.abs(out - ref)))
        assert err < 5e-3, f"{name}: max abs err vs reference: {err}"

    print("KERNEL_OK")
</pallas_src>

<mosaic_0001>
module attributes {stable_mosaic.version = 11 : i64} {
  func.func @_fused_kernel(%arg0: i32, %arg1: i32, %arg2: memref<128x784xf32, #tpu.memory_space<vmem>>, %arg3: memref<784x256xf32, #tpu.memory_space<vmem>>, %arg4: memref<1x256xf32, #tpu.memory_space<vmem>>, %arg5: memref<1x256xf32, #tpu.memory_space<vmem>>, %arg6: memref<1x256xf32, #tpu.memory_space<vmem>>, %arg7: memref<128x256xbf16, #tpu.memory_space<vmem>>, %arg8: memref<1x256xf32, #tpu.memory_space<vmem>>, %arg9: memref<1x1xf32, #tpu.memory_space<vmem>>, %arg10: memref<1x128xf32, #tpu.memory_space<vmem>>, %arg11: memref<256x256xf32, #tpu.memory_space<vmem>>, %arg12: memref<1x256xf32, #tpu.memory_space<vmem>>, %arg13: memref<1x256xf32, #tpu.memory_space<vmem>>) attributes {dimension_semantics = [#tpu.dimension_semantics<arbitrary>, #tpu.dimension_semantics<arbitrary>], iteration_bounds = array<i64: 2, 2>, scalar_prefetch = 0 : i64, scratch_operands = 3 : i64, tpu.core_type = #tpu.core_type<tc>, window_params = [{transform_indices = @transform_0, window_bounds = array<i64: 128, 784>}, {pipeline_mode = #tpu.pipeline_mode<synchronous>, transform_indices = @transform_1, window_bounds = array<i64: 784, 256>}, {pipeline_mode = #tpu.pipeline_mode<synchronous>, transform_indices = @transform_2, window_bounds = array<i64: 1, 256>}, {pipeline_mode = #tpu.pipeline_mode<synchronous>, transform_indices = @transform_3, window_bounds = array<i64: 1, 256>}, {pipeline_mode = #tpu.pipeline_mode<synchronous>, transform_indices = @transform_4, window_bounds = array<i64: 1, 256>}, {transform_indices = @transform_5, window_bounds = array<i64: 128, 256>}, {pipeline_mode = #tpu.pipeline_mode<synchronous>, transform_indices = @transform_6, window_bounds = array<i64: 1, 256>}, {pipeline_mode = #tpu.pipeline_mode<synchronous>, transform_indices = @transform_7, window_bounds = array<i64: 1, 1>}, {transform_indices = @transform_8, window_bounds = array<i64: 1, 128>}]} {
    %c128_i32 = arith.constant 128 : i32
    %0 = arith.muli %arg1, %c128_i32 : i32
    %1 = tpu.assume_multiple %0, 128 : i32
    %c0_i32 = arith.constant 0 : i32
    %2 = arith.cmpi eq, %arg0, %c0_i32 : i32
    %3 = arith.extui %2 : i1 to i32
    %c0_i32_0 = arith.constant 0 : i32
    %4 = arith.cmpi ne, %3, %c0_i32_0 : i32
    scf.if %4 {
      %c0_i32_2 = arith.constant 0 : i32
      %8 = arith.cmpi eq, %arg1, %c0_i32_2 : i32
      %9 = arith.extui %8 : i1 to i32
      %c0_i32_3 = arith.constant 0 : i32
      %10 = arith.cmpi ne, %9, %c0_i32_3 : i32
      scf.if %10 {
        %cst_22 = arith.constant 0.000000e+00 : f32
        %40 = vector.broadcast %cst_22 : f32 to vector<1x256xf32>
        %c0_23 = arith.constant 0 : index
        %c0_24 = arith.constant 0 : index
        %41 = vector.load %arg12[%c0_23, %c0_24] : memref<1x256xf32, #tpu.memory_space<vmem>>, vector<1x256xf32>
        tpu.vector_store %arg12[%c0_23, %c0_24], %40 {strides = array<i32>} : memref<1x256xf32, #tpu.memory_space<vmem>>, vector<1x256xf32>,
        %cst_25 = arith.constant 0.000000e+00 : f32
        %42 = vector.broadcast %cst_25 : f32 to vector<1x256xf32>
        %c0_26 = arith.constant 0 : index
        %c0_27 = arith.constant 0 : index
        %43 = vector.load %arg13[%c0_26, %c0_27] : memref<1x256xf32, #tpu.memory_space<vmem>>, vector<1x256xf32>
        tpu.vector_store %arg13[%c0_26, %c0_27], %42 {strides = array<i32>} : memref<1x256xf32, #tpu.memory_space<vmem>>, vector<1x256xf32>,
      } else {
      }
      %c0 = arith.constant 0 : index
      %c0_4 = arith.constant 0 : index
      %11 = vector.load %arg2[%c0, %c0_4] : memref<128x784xf32, #tpu.memory_space<vmem>>, vector<128x784xf32>
      %c0_5 = arith.constant 0 : index
      %c0_6 = arith.constant 0 : index
      %12 = vector.load %arg3[%c0_5, %c0_6] : memref<784x256xf32, #tpu.memory_space<vmem>>, vector<784x256xf32>
      %cst = arith.constant dense<0.000000e+00> : vector<128x256xf32>
      %13 = tpu.matmul %11, %12, %cst {dimension_numbers = #tpu.dot_dimension_numbers<[1], [0], [0], [1], [0, 0, 1, 1], [], []>} : vector<128x784xf32>, vector<784x256xf32>, vector<128x256xf32> -> vector<128x256xf32>
      %c0_7 = arith.constant 0 : index
      %c0_8 = arith.constant 0 : index
      %14 = vector.load %arg4[%c0_7, %c0_8] : memref<1x256xf32, #tpu.memory_space<vmem>>, vector<1x256xf32>
      %15 = vector.broadcast %14 : vector<1x256xf32> to vector<128x256xf32>
      %16 = arith.addf %13, %15 : vector<128x256xf32>
      %17 = arith.index_cast %1 : i32 to index
      %c0_9 = arith.constant 0 : index
      %18 = vector.load %arg11[%17, %c0_9] : memref<256x256xf32, #tpu.memory_space<vmem>>, vector<128x256xf32>
      tpu.vector_store %arg11[%17, %c0_9], %16 {strides = array<i32>} : memref<256x256xf32, #tpu.memory_space<vmem>>, vector<128x256xf32>,
      %c128_i32_10 = arith.constant 128 : i32
      %19 = arith.muli %arg1, %c128_i32_10 : i32
      %20 = tpu.iota {dimensions = array<i32: 0>} : vector<128x1xi32>
      %21 = vector.broadcast %19 : i32 to vector<128x1xi32>
      %22 = arith.addi %21, %20 : vector<128x1xi32>
      %c200_i32 = arith.constant 200 : i32
      %23 = vector.broadcast %c200_i32 : i32 to vector<128x1xi32>
      %24 = arith.cmpi slt, %22, %23 : vector<128x1xi32>
      %cst_11 = arith.constant 0.000000e+00 : f32
      %25 = vector.shape_cast %24 : vector<128x1xi1> to vector<128x1xi1>
      %26 = vector.broadcast %25 : vector<128x1xi1> to vector<128x256xi1>
      %27 = vector.broadcast %cst_11 : f32 to vector<128x256xf32>
      %28 = arith.select %26, %16, %27 : vector<128x256xi1>, vector<128x256xf32>
      %c0_12 = arith.constant 0 : index
      %c0_13 = arith.constant 0 : index
      %29 = vector.load %arg12[%c0_12, %c0_13] : memref<1x256xf32, #tpu.memory_space<vmem>>, vector<1x256xf32>
      %cst_14 = arith.constant dense<0.000000e+00> : vector<256xf32>
      %30 = vector.multi_reduction <add>, %28, %cst_14 [0] : vector<128x256xf32> to vector<256xf32>
      %31 = vector.shape_cast %30 : vector<256xf32> to vector<1x256xf32>
      %32 = arith.addf %29, %31 : vector<1x256xf32>
      %c0_15 = arith.constant 0 : index
      %c0_16 = arith.constant 0 : index
      %33 = vector.load %arg12[%c0_15, %c0_16] : memref<1x256xf32, #tpu.memory_space<vmem>>, vector<1x256xf32>
      tpu.vector_store %arg12[%c0_15, %c0_16], %32 {strides = array<i32>} : memref<1x256xf32, #tpu.memory_space<vmem>>, vector<1x256xf32>,
      %c0_17 = arith.constant 0 : index
      %c0_18 = arith.constant 0 : index
      %34 = vector.load %arg13[%c0_17, %c0_18] : memref<1x256xf32, #tpu.memory_space<vmem>>, vector<1x256xf32>
      %35 = arith.mulf %28, %28 : vector<128x256xf32>
      %cst_19 = arith.constant dense<0.000000e+00> : vector<256xf32>
      %36 = vector.multi_reduction <add>, %35, %cst_19 [0] : vector<128x256xf32> to vector<256xf32>
      %37 = vector.shape_cast %36 : vector<256xf32> to vector<1x256xf32>
      %38 = arith.addf %34, %37 : vector<1x256xf32>
      %c0_20 = arith.constant 0 : index
      %c0_21 = arith.constant 0 : index
      %39 = vector.load %arg13[%c0_20, %c0_21] : memref<1x256xf32, #tpu.memory_space<vmem>>, vector<1x256xf32>
      tpu.vector_store %arg13[%c0_20, %c0_21], %38 {strides = array<i32>} : memref<1x256xf32, #tpu.memory_space<vmem>>, vector<1x256xf32>,
    } else {
    }
    %c1_i32 = arith.constant 1 : i32
    %5 = arith.cmpi eq, %arg0, %c1_i32 : i32
    %6 = arith.extui %5 : i1 to i32
    %c0_i32_1 = arith.constant 0 : i32
    %7 = arith.cmpi ne, %6, %c0_i32_1 : i32
    scf.if %7 {
      %c0 = arith.constant 0 : index
      %c0_2 = arith.constant 0 : index
      %8 = vector.load %arg12[%c0, %c0_2] : memref<1x256xf32, #tpu.memory_space<vmem>>, vector<1x256xf32>
      %cst = arith.constant 5.000000e-03 : f32
      %9 = vector.broadcast %cst : f32 to vector<1x256xf32>
      %10 = arith.mulf %8, %9 : vector<1x256xf32>
      %c0_3 = arith.constant 0 : index
      %c0_4 = arith.constant 0 : index
      %11 = vector.load %arg13[%c0_3, %c0_4] : memref<1x256xf32, #tpu.memory_space<vmem>>, vector<1x256xf32>
      %cst_5 = arith.constant 5.000000e-03 : f32
      %12 = vector.broadcast %cst_5 : f32 to vector<1x256xf32>
      %13 = arith.mulf %11, %12 : vector<1x256xf32>
      %14 = arith.mulf %10, %10 : vector<1x256xf32>
      %15 = arith.subf %13, %14 : vector<1x256xf32>
      %cst_6 = arith.constant 0.000000e+00 : f32
      %16 = vector.broadcast %cst_6 : f32 to vector<1x256xf32>
      %17 = arith.maximumf %15, %16 : vector<1x256xf32>
      %c0_7 = arith.constant 0 : index
      %c0_8 = arith.constant 0 : index
      %18 = vector.load %arg5[%c0_7, %c0_8] : memref<1x256xf32, #tpu.memory_space<vmem>>, vector<1x256xf32>
      %cst_9 = arith.constant 9.99999974E-6 : f32
      %19 = vector.broadcast %cst_9 : f32 to vector<1x256xf32>
      %20 = arith.addf %17, %19 : vector<1x256xf32>
      %21 = math.rsqrt %20 : vector<1x256xf32>
      %22 = arith.mulf %18, %21 : vector<1x256xf32>
      %c0_10 = arith.constant 0 : index
      %c0_11 = arith.constant 0 : index
      %23 = vector.load %arg6[%c0_10, %c0_11] : memref<1x256xf32, #tpu.memory_space<vmem>>, vector<1x256xf32>
      %24 = arith.mulf %10, %22 : vector<1x256xf32>
      %25 = arith.subf %23, %24 : vector<1x256xf32>
      %26 = arith.index_cast %1 : i32 to index
      %c0_12 = arith.constant 0 : index
      %27 = vector.load %arg11[%26, %c0_12] : memref<256x256xf32, #tpu.memory_space<vmem>>, vector<128x256xf32>
      %28 = vector.broadcast %22 : vector<1x256xf32> to vector<128x256xf32>
      %29 = arith.mulf %27, %28 : vector<128x256xf32>
      %30 = vector.broadcast %25 : vector<1x256xf32> to vector<128x256xf32>
      %31 = arith.addf %29, %30 : vector<128x256xf32>
      %cst_13 = arith.constant 0.000000e+00 : f32
      %32 = vector.broadcast %cst_13 : f32 to vector<128x256xf32>
      %33 = arith.maximumf %31, %32 : vector<128x256xf32>
      %c0_14 = arith.constant 0 : index
      %c0_15 = arith.constant 0 : index
      %34 = vector.load %arg7[%c0_14, %c0_15] : memref<128x256xbf16, #tpu.memory_space<vmem>>, vector<128x256xbf16>
      %35 = arith.extf %34 : vector<128x256xbf16> to vector<128x256xf32>
      %36 = arith.mulf %33, %35 : vector<128x256xf32>
      %c0_16 = arith.constant 0 : index
      %c0_17 = arith.constant 0 : index
      %37 = vector.load %arg8[%c0_16, %c0_17] : memref<1x256xf32, #tpu.memory_space<vmem>>, vector<1x256xf32>
      %38 = tpu.transpose %36, [1, 0] : vector<128x256xf32> -> vector<256x128xf32>
      %cst_18 = arith.constant dense<0.000000e+00> : vector<1x128xf32>
      %39 = tpu.matmul %37, %38, %cst_18 {dimension_numbers = #tpu.dot_dimension_numbers<[1], [0], [0], [1], [0, 0, 1, 1], [], []>} : vector<1x256xf32>, vector<256x128xf32>, vector<1x128xf32> -> vector<1x128xf32>
      %c0_19 = arith.constant 0 : index
      %c0_20 = arith.constant 0 : index
      %40 = vector.load %arg9[%c0_19, %c0_20] : memref<1x1xf32, #tpu.memory_space<vmem>>, vector<1x1xf32>
      %41 = vector.broadcast %40 : vector<1x1xf32> to vector<1x128xf32>
      %42 = arith.addf %39, %41 : vector<1x128xf32>
      %cst_21 = arith.constant 0.000000e+00 : f32
      %43 = vector.broadcast %cst_21 : f32 to vector<1x128xf32>
      %44 = arith.subf %43, %42 : vector<1x128xf32>
      %45 = math.exp %44 : vector<1x128xf32>
      %cst_22 = arith.constant 1.000000e+00 : f32
      %46 = vector.broadcast %cst_22 : f32 to vector<1x128xf32>
      %47 = arith.addf %46, %45 : vector<1x128xf32>
      %cst_23 = arith.constant 1.000000e+00 : f32
      %48 = vector.broadcast %cst_23 : f32 to vector<1x128xf32>
      %49 = arith.divf %48, %47 : vector<1x128xf32>
      %c0_24 = arith.constant 0 : index
      %c0_25 = arith.constant 0 : index
      %50 = vector.load %arg10[%c0_24, %c0_25] : memref<1x128xf32, #tpu.memory_space<vmem>>, vector<1x128xf32>
      tpu.vector_store %arg10[%c0_24, %c0_25], %49 {strides = array<i32>} : memref<1x128xf32, #tpu.memory_space<vmem>>, vector<1x128xf32>,
    } else {
    }
    return
  }
  func.func @transform_0(%arg0: i32, %arg1: i32) -> (i32, i32) {
    %c1_i32 = arith.constant 1 : i32
    %0 = arith.subi %c1_i32, %arg0 : i32
    %1 = arith.muli %arg1, %0 : i32
    %c0_i32 = arith.constant 0 : i32
    %c0_i32_0 = arith.constant 0 : i32
    return %1, %c0_i32 : i32, i32
  }
  func.func @transform_1(%arg0: i32, %arg1: i32) -> (i32, i32) {
    %c0_i32 = arith.constant 0 : i32
    %c0_i32_0 = arith.constant 0 : i32
    %c0_i32_1 = arith.constant 0 : i32
    return %c0_i32, %c0_i32_0 : i32, i32
  }
  func.func @transform_2(%arg0: i32, %arg1: i32) -> (i32, i32) {
    %c0_i32 = arith.constant 0 : i32
    %c0_i32_0 = arith.constant 0 : i32
    %c0_i32_1 = arith.constant 0 : i32
    return %c0_i32, %c0_i32_0 : i32, i32
  }
  func.func @transform_3(%arg0: i32, %arg1: i32) -> (i32, i32) {
    %c0_i32 = arith.constant 0 : i32
    %c0_i32_0 = arith.constant 0 : i32
    %c0_i32_1 = arith.constant 0 : i32
    return %c0_i32, %c0_i32_0 : i32, i32
  }
  func.func @transform_4(%arg0: i32, %arg1: i32) -> (i32, i32) {
    %c0_i32 = arith.constant 0 : i32
    %c0_i32_0 = arith.constant 0 : i32
    %c0_i32_1 = arith.constant 0 : i32
    return %c0_i32, %c0_i32_0 : i32, i32
  }
  func.func @transform_5(%arg0: i32, %arg1: i32) -> (i32, i32) {
    %0 = arith.muli %arg1, %arg0 : i32
    %c0_i32 = arith.constant 0 : i32
    %c0_i32_0 = arith.constant 0 : i32
    return %0, %c0_i32 : i32, i32
  }
  func.func @transform_6(%arg0: i32, %arg1: i32) -> (i32, i32) {
    %c0_i32 = arith.constant 0 : i32
    %c0_i32_0 = arith.constant 0 : i32
    %c0_i32_1 = arith.constant 0 : i32
    return %c0_i32, %c0_i32_0 : i32, i32
  }
  func.func @transform_7(%arg0: i32, %arg1: i32) -> (i32, i32) {
    %c0_i32 = arith.constant 0 : i32
    %c0_i32_0 = arith.constant 0 : i32
    %c0_i32_1 = arith.constant 0 : i32
    return %c0_i32, %c0_i32_0 : i32, i32
  }
  func.func @transform_8(%arg0: i32, %arg1: i32) -> (i32, i32) {
    %0 = arith.muli %arg1, %arg0 : i32
    %c0_i32 = arith.constant 0 : i32
    %c0_i32_0 = arith.constant 0 : i32
    return %c0_i32, %0 : i32, i32
  }
}

</mosaic_0001>

<llo_original>
// kernel: tpu_custom_call.1
$region0: #{tpu_custom_call.1}
  #allocation0 [shape = 'u32[]', space=smem, size = 0x4, offset = 0x4, fixed_abs, tag = 'smem constant byte address 0x4 - core index']
  #allocation1 [shape = 'u32[144,128]{1,0:T(1,128)}', space=vmem, size = 0x12000, scoped, tag = 'internal scratch']
  #allocation2 [shape = 'f32[256,256]{1,0:T(8,128)}', space=vmem, size = 0x40000, scoped, tag = 'scratch operand']
  #allocation3 [shape = 'f32[1,256]{1,0:T(1,128)}', space=vmem, size = 0x400, scoped, tag = 'scratch operand']
  #allocation4 [shape = 'f32[1,256]{1,0:T(1,128)}', space=vmem, size = 0x400, scoped, tag = 'scratch operand']
  #allocation5 [shape = 'f32[1,1]{1,0:T(1,128)S(1)}', space=vmem, size = 0x200, scoped, tag = 'scoped memory for tpu_custom_call.1']
  %s0 = inlined_call_operand.hbm [shape: f32[200,784], index: 0, kind: input, shape index: {}]
  %s1 = inlined_call_operand.hbm [shape: f32[784,256], index: 1, kind: input, shape index: {}]
  %s2 = inlined_call_operand.vmem [shape: f32[1,256], index: 2, kind: input, shape index: {}]
  %s3 = inlined_call_operand.vmem [shape: f32[1,256], index: 3, kind: input, shape index: {}]
  %s4 = inlined_call_operand.vmem [shape: f32[1,256], index: 4, kind: input, shape index: {}]
  %s5 = inlined_call_operand.hbm [shape: bf16[200,256], index: 5, kind: input, shape index: {}]
  %s6 = inlined_call_operand.vmem [shape: f32[1,256], index: 6, kind: input, shape index: {}]
  %s7 = inlined_call_operand.<no memory space> [shape: f32[1,1], index: 7, kind: input, shape index: {}]
  %s8 = inlined_call_operand.hbm [shape: f32[1,256], index: 8, kind: output, shape index: {}]
  %s9 = sld [smem:[#allocation0]]
  $region89: #{tpu_custom_call.1} parent=0
    _
  %s11 = ssub.s32 1, %s9
  %s12 = scalar_select 0, %s11, %s9
  %v13 = vstv %s7
  %14 = vst [vmem:[#allocation5] sm:$0x1] %v13
  $region1: #{tpu_custom_call.1} parent=0
    #allocation6 [shape = 'u8[917504]{0}', space=vmem, size = 0xe0000, scoped, tag = 'input window, operand 0']
    #allocation7 [shape = 's32[2]{0}', space=sflag, size = 0x8, scoped, tag = 'scoped memory for tpu_custom_call.1']
    #allocation8 [shape = 's32[2]{0}', space=sflag, size = 0x8, scoped, tag = 'scoped memory for tpu_custom_call.1']
    #allocation9 [shape = 'u8[802816]{0}', space=vmem, size = 0xc4000, scoped, tag = 'input window, operand 1, single buffered']
    #allocation10 [shape = 's32[1]{0}', space=sflag, size = 0x4, scoped, tag = 'scoped memory for tpu_custom_call.1']
    #allocation11 [shape = 'u8[131072]{0}', space=vmem, size = 0x20000, scoped, tag = 'input window, operand 5']
    #allocation12 [shape = 'u8[1024]{0}', space=vmem, size = 0x400, scoped, tag = 'output window, operand 0']
    %15 = vsyncpa [#allocation7], 0
    %s16 = scalar_lea.sflag [#allocation7], 1
    %17 = vsyncpa %s16, 0
    %18 = vsyncpa [#allocation10], 0
    %19 = vsyncpa [#allocation8], 0
    %s20 = scalar_lea.sflag [#allocation8], 1
    %21 = vsyncpa %s20, 0
    loop: start=0, step=1, limit=6
    $region2: #{tpu_custom_call.1} parent=1 // loop_pre_header
      _
    $region3: #{tpu_custom_call.1} parent=1 // loop_header
      %s23 = sphi 0, %s27
      %p24 = scmp.ge.s32.totalorder %s23, 6
      %s30 = sphi 0, %s42
      %s31 = sphi 0, %s38
      %s32 = sphi 0, %s30
      %s33 = sphi 0, %s31
      %s34 = sphi 0, %s32
      %s35 = sphi 0, %s33
      %s49 = sphi 0, %s51
      %s52 = sphi 0, %s49
      %s53 = sphi 0, %s52
      %s69 = sphi 0, %s53
      %s73 = sphi 0, %s73
      %s75 = sphi 0, %s73
      %s76 = sphi 0, %s75
      %s90 = sphi 0, %s76
      %s94 = sphi 0, %s94
      %s96 = sphi 0, %s94
      %s97 = sphi 0, %s96
      %s111 = sphi 0, %s97
      %s115 = sphi 0, %s115
      %s117 = sphi 0, %s115
      %s118 = sphi 0, %s117
      %s132 = sphi 0, %s118
      %s136 = sphi 0, %s136
      %s138 = sphi 0, %s136
      %s139 = sphi 0, %s138
      %s153 = sphi 0, %s139
      %s161 = sphi 0, %s163
      %s164 = sphi 0, %s161
      %s165 = sphi 0, %s164
      %s181 = sphi 0, %s165
      %s185 = sphi 0, %s185
      %s187 = sphi 0, %s185
      %s188 = sphi 0, %s187
      %s202 = sphi 0, %s188
      %s206 = sphi 0, %s206
      %s208 = sphi 0, %s206
      %s209 = sphi 0, %s208
      %s223 = sphi 0, %s209
      %s231 = sphi 0, %s233
      %s234 = sphi 0, %s231
      %s235 = sphi 0, %s234
      %s251 = sphi 0, %s235
    $region4: #{tpu_custom_call.1} parent=1 // loop_header_branch
      %26 = sbr.rel (%p24) target = $region8
    $region5: #{tpu_custom_call.1} parent=1 // loop_body
      %s28 = ssub.s32 %s23, 1
      %s29 = ssub.s32 %s23, 2
      %s36 = sadd.s32 1, %s31
      %p37 = scmp.ge.s32.totalorder %s36, 2
      %s38 = scalar_select %p37, 0, %s36
      %s39 = sadd.s32 1, %s30
      %s40 = scalar_select %p37, %s39, %s30
      %p41 = scmp.ge.s32.totalorder %s40, 2
      %s42 = scalar_select %p41, 0, %s40
      %s43 = ssub.s32 1, %s30
      %s44 = smul.u32 %s31, %s43
      %s45 = ssub.s32 1, %s42
      %s46 = smul.u32 %s38, %s45
      %s47 = ssub.s32 %s44, %s46
      %p48 = scmp.eq.s32.totalorder %s47, 0
      %s50 = sadd.s32 %s49, 1
      %s51 = scalar_select %p48, %s49, %s50
      %p54 = pneg %p48
      %p55 = scmp.eq.s32.totalorder %s23, 3
      %p56 = por %p54, %p55
      %p57 = scmp.ne.s32.totalorder %s49, %s52
      %p58 = scmp.eq.s32.totalorder %s23, 0
      %p59 = por %p57, %p58
      %p60 = scmp.ne.s32.totalorder %s49, %s52
      %p61 = scmp.eq.s32.totalorder %s28, 3
      %p62 = por %p60, %p61
      %p63 = scmp.ne.s32.totalorder %s52, %s53
      %p64 = scmp.eq.s32.totalorder %s28, 0
      %p65 = por %p63, %p64
      %p66 = scmp.ne.s32.totalorder %s52, %s53
      %p67 = scmp.eq.s32.totalorder %s29, 3
      %p68 = por %p66, %p67
      %p70 = scmp.ne.s32.totalorder %s53, %s69
      %p71 = scmp.eq.s32.totalorder %s29, 0
      %p72 = por %p70, %p71
      %s74 = sadd.s32 %s73, 1
      %p77 = scmp.eq.s32.totalorder %s23, 3
      %p78 = scmp.ne.s32.totalorder %s73, %s75
      %p79 = scmp.eq.s32.totalorder %s23, 0
      %p80 = por %p78, %p79
      %p81 = scmp.ne.s32.totalorder %s73, %s75
      %p82 = scmp.eq.s32.totalorder %s28, 3
      %p83 = por %p81, %p82
      %p84 = scmp.ne.s32.totalorder %s75, %s76
      %p85 = scmp.eq.s32.totalorder %s28, 0
      %p86 = por %p84, %p85
      %p87 = scmp.ne.s32.totalorder %s75, %s76
      %p88 = scmp.eq.s32.totalorder %s29, 3
      %p89 = por %p87, %p88
      %p91 = scmp.ne.s32.totalorder %s76, %s90
      %p92 = scmp.eq.s32.totalorder %s29, 0
      %p93 = por %p91, %p92
      %s95 = sadd.s32 %s94, 1
      %p98 = scmp.eq.s32.totalorder %s23, 3
      %p99 = scmp.ne.s32.totalorder %s94, %s96
      %p100 = scmp.eq.s32.totalorder %s23, 0
      %p101 = por %p99, %p100
      %p102 = scmp.ne.s32.totalorder %s94, %s96
      %p103 = scmp.eq.s32.totalorder %s28, 3
      %p104 = por %p102, %p103
      %p105 = scmp.ne.s32.totalorder %s96, %s97
      %p106 = scmp.eq.s32.totalorder %s28, 0
      %p107 = por %p105, %p106
      %p108 = scmp.ne.s32.totalorder %s96, %s97
      %p109 = scmp.eq.s32.totalorder %s29, 3
      %p110 = por %p108, %p109
      %p112 = scmp.ne.s32.totalorder %s97, %s111
      %p113 = scmp.eq.s32.totalorder %s29, 0
      %p114 = por %p112, %p113
      %s116 = sadd.s32 %s115, 1
      %p119 = scmp.eq.s32.totalorder %s23, 3
      %p120 = scmp.ne.s32.totalorder %s115, %s117
      %p121 = scmp.eq.s32.totalorder %s23, 0
      %p122 = por %p120, %p121
      %p123 = scmp.ne.s32.totalorder %s115, %s117
      %p124 = scmp.eq.s32.totalorder %s28, 3
      %p125 = por %p123, %p124
      %p126 = scmp.ne.s32.totalorder %s117, %s118
      %p127 = scmp.eq.s32.totalorder %s28, 0
      %p128 = por %p126, %p127
      %p129 = scmp.ne.s32.totalorder %s117, %s118
      %p130 = scmp.eq.s32.totalorder %s29, 3
      %p131 = por %p129, %p130
      %p133 = scmp.ne.s32.totalorder %s118, %s132
      %p134 = scmp.eq.s32.totalorder %s29, 0
      %p135 = por %p133, %p134
      %s137 = sadd.s32 %s136, 1
      %p140 = scmp.eq.s32.totalorder %s23, 3
      %p141 = scmp.ne.s32.totalorder %s136, %s138
      %p142 = scmp.eq.s32.totalorder %s23, 0
      %p143 = por %p141, %p142
      %p144 = scmp.ne.s32.totalorder %s136, %s138
      %p145 = scmp.eq.s32.totalorder %s28, 3
      %p146 = por %p144, %p145
      %p147 = scmp.ne.s32.totalorder %s138, %s139
      %p148 = scmp.eq.s32.totalorder %s28, 0
      %p149 = por %p147, %p148
      %p150 = scmp.ne.s32.totalorder %s138, %s139
      %p151 = scmp.eq.s32.totalorder %s29, 3
      %p152 = por %p150, %p151
      %p154 = scmp.ne.s32.totalorder %s139, %s153
      %p155 = scmp.eq.s32.totalorder %s29, 0
      %p156 = por %p154, %p155
      %s157 = smul.u32 %s31, %s30
      %s158 = smul.u32 %s38, %s42
      %s159 = ssub.s32 %s157, %s158
      %p160 = scmp.eq.s32.totalorder %s159, 0
      %s162 = sadd.s32 %s161, 1
      %s163 = scalar_select %p160, %s161, %s162
      %p166 = pneg %p160
      %p167 = scmp.eq.s32.totalorder %s23, 3
      %p168 = por %p166, %p167
      %p169 = scmp.ne.s32.totalorder %s161, %s164
      %p170 = scmp.eq.s32.totalorder %s23, 0
      %p171 = por %p169, %p170
      %p172 = scmp.ne.s32.totalorder %s161, %s164
      %p173 = scmp.eq.s32.totalorder %s28, 3
      %p174 = por %p172, %p173
      %p175 = scmp.ne.s32.totalorder %s164, %s165
      %p176 = scmp.eq.s32.totalorder %s28, 0
      %p177 = por %p175, %p176
      %p178 = scmp.ne.s32.totalorder %s164, %s165
      %p179 = scmp.eq.s32.totalorder %s29, 3
      %p180 = por %p178, %p179
      %p182 = scmp.ne.s32.totalorder %s165, %s181
      %p183 = scmp.eq.s32.totalorder %s29, 0
      %p184 = por %p182, %p183
      %s186 = sadd.s32 %s185, 1
      %p189 = scmp.eq.s32.totalorder %s23, 3
      %p190 = scmp.ne.s32.totalorder %s185, %s187
      %p191 = scmp.eq.s32.totalorder %s23, 0
      %p192 = por %p190, %p191
      %p193 = scmp.ne.s32.totalorder %s185, %s187
      %p194 = scmp.eq.s32.totalorder %s28, 3
      %p195 = por %p193, %p194
      %p196 = scmp.ne.s32.totalorder %s187, %s188
      %p197 = scmp.eq.s32.totalorder %s28, 0
      %p198 = por %p196, %p197
      %p199 = scmp.ne.s32.totalorder %s187, %s188
      %p200 = scmp.eq.s32.totalorder %s29, 3
      %p201 = por %p199, %p200
      %p203 = scmp.ne.s32.totalorder %s188, %s202
      %p204 = scmp.eq.s32.totalorder %s29, 0
      %p205 = por %p203, %p204
      %s207 = sadd.s32 %s206, 1
      %p210 = scmp.eq.s32.totalorder %s23, 3
      %p211 = scmp.ne.s32.totalorder %s206, %s208
      %p212 = scmp.eq.s32.totalorder %s23, 0
      %p213 = por %p211, %p212
      %p214 = scmp.ne.s32.totalorder %s206, %s208
      %p215 = scmp.eq.s32.totalorder %s28, 3
      %p216 = por %p214, %p215
      %p217 = scmp.ne.s32.totalorder %s208, %s209
      %p218 = scmp.eq.s32.totalorder %s28, 0
      %p219 = por %p217, %p218
      %p220 = scmp.ne.s32.totalorder %s208, %s209
      %p221 = scmp.eq.s32.totalorder %s29, 3
      %p222 = por %p220, %p221
      %p224 = scmp.ne.s32.totalorder %s209, %s223
      %p225 = scmp.eq.s32.totalorder %s29, 0
      %p226 = por %p224, %p225
      %s227 = smul.u32 %s31, %s30
      %s228 = smul.u32 %s38, %s42
      %s229 = ssub.s32 %s227, %s228
      %p230 = scmp.eq.s32.totalorder %s229, 0
      %s232 = sadd.s32 %s231, 1
      %s233 = scalar_select %p230, %s231, %s232
      %p236 = pneg %p230
      %p237 = scmp.eq.s32.totalorder %s23, 3
      %p238 = por %p236, %p237
      %p239 = scmp.ne.s32.totalorder %s231, %s234
      %p240 = scmp.eq.s32.totalorder %s23, 0
      %p241 = por %p239, %p240
      %p242 = scmp.ne.s32.totalorder %s231, %s234
      %p243 = scmp.eq.s32.totalorder %s28, 3
      %p244 = por %p242, %p243
      %p245 = scmp.ne.s32.totalorder %s234, %s235
      %p246 = scmp.eq.s32.totalorder %s28, 0
      %p247 = por %p245, %p246
      %p248 = scmp.ne.s32.totalorder %s234, %s235
      %p249 = scmp.eq.s32.totalorder %s29, 3
      %p250 = por %p248, %p249
      %p252 = scmp.ne.s32.totalorder %s235, %s251
      %p253 = scmp.eq.s32.totalorder %s29, 0
      %p254 = por %p252, %p253
      %p255 = scmp.le.s32.totalorder 1, %s23
      %p256 = scmp.lt.s32.totalorder %s23, 5
      %p257 = pnand %p255, %p256
      %p258 = pneg %p257
      // Predicated region
      $region9: #{tpu_custom_call.1} parent=5 // pred_check
        _
      $region10: #{tpu_custom_call.1} parent=5 // pred_check_branch
        %260 = sbr.rel (%p257) target = $region12
      $region11: #{tpu_custom_call.1} parent=5 // pred_region
        %s261 = ssub.s32 %s23, 1
        // Predicated region
        $region13: #{tpu_custom_call.1} parent=11 // pred_check
          %p262 = pneg %p86
        $region14: #{tpu_custom_call.1} parent=11 // pred_check_branch
          %264 = sbr.rel (%p262) target = $region16
        $region15: #{tpu_custom_call.1} parent=11 // pred_region
          %s266 = ssub.s32 25088, 25088
          %267 = vsyncadd [#allocation10], %s266
          %s268 = sshll.u32 [#allocation9], 4
          %s269 = int_to_ptr.vmem [resolvable:$true] %s268
          %274 = dma.hbm_to_vmem [thread:$0]  %s1, 25088, %s269, [#allocation10], 256, 256, 16
        $region16: #{tpu_custom_call.1} parent=11 // pred_fallthru
          _
        // Predicated region
        $region17: #{tpu_custom_call.1} parent=11 // pred_check
          %p275 = pneg %p107
        $region18: #{tpu_custom_call.1} parent=11 // pred_check_branch
          %277 = sbr.rel (%p275) target = $region20
        $region19: #{tpu_custom_call.1} parent=11 // pred_region
          _
        $region20: #{tpu_custom_call.1} parent=11 // pred_fallthru
          _
        // Predicated region
        $region21: #{tpu_custom_call.1} parent=11 // pred_check
          %p278 = pneg %p128
        $region22: #{tpu_custom_call.1} parent=11 // pred_check_branch
          %280 = sbr.rel (%p278) target = $region24
        $region23: #{tpu_custom_call.1} parent=11 // pred_region
          _
        $region24: #{tpu_custom_call.1} parent=11 // pred_fallthru
          _
        // Predicated region
        $region25: #{tpu_custom_call.1} parent=11 // pred_check
          %p281 = pneg %p149
        $region26: #{tpu_custom_call.1} parent=11 // pred_check_branch
          %283 = sbr.rel (%p281) target = $region28
        $region27: #{tpu_custom_call.1} parent=11 // pred_region
          _
        $region28: #{tpu_custom_call.1} parent=11 // pred_fallthru
          _
        // Predicated region
        $region29: #{tpu_custom_call.1} parent=11 // pred_check
          %p284 = pneg %p198
        $region30: #{tpu_custom_call.1} parent=11 // pred_check_branch
          %286 = sbr.rel (%p284) target = $region32
        $region31: #{tpu_custom_call.1} parent=11 // pred_region
          _
        $region32: #{tpu_custom_call.1} parent=11 // pred_fallthru
          _
        // Predicated region
        $region33: #{tpu_custom_call.1} parent=11 // pred_check
          %p287 = pneg %p219
        $region34: #{tpu_custom_call.1} parent=11 // pred_check_branch
          %289 = sbr.rel (%p287) target = $region36
        $region35: #{tpu_custom_call.1} parent=11 // pred_region
          _
        $region36: #{tpu_custom_call.1} parent=11 // pred_fallthru
          _
      $region12: #{tpu_custom_call.1} parent=5 // pred_fallthru
        _
      %p290 = scmp.lt.s32.totalorder %s23, 4
      // Predicated region
      $region37: #{tpu_custom_call.1} parent=5 // pred_check
        %p291 = pneg %p290
      $region38: #{tpu_custom_call.1} parent=5 // pred_check_branch
        %293 = sbr.rel (%p291) target = $region40
      $region39: #{tpu_custom_call.1} parent=5 // pred_region
        // Predicated region
        $region41: #{tpu_custom_call.1} parent=39 // pred_check
          %p294 = pneg %p59
        $region42: #{tpu_custom_call.1} parent=39 // pred_check_branch
          %296 = sbr.rel (%p294) target = $region44
        $region43: #{tpu_custom_call.1} parent=39 // pred_region
          %s297 = sand.u32 %s23, 1
          %s298 = scalar_lea.sflag [#allocation7], %s297
          %s299 = sand.u32 %s49, 1
          %s300 = smul.addr %s299, 896
          %s301 = scalar_lea.vmem [#allocation6], %s300
          %s302 = ssub.s32 1, %s30
          %s303 = smul.u32 %s31, %s302
          %s304 = smul.u32 16, %s303
          %s305 = ssub.s32 25, %s304
          %p306 = scmp.lt.s32.totalorder %s305, 16
          %s307 = scalar_select %p306, %s305, 16
          %s308 = smul.u32 128, %s307
          %s309 = smul.u32 %s308, 7
          %s311 = ssub.s32 14336, %s309
          %312 = vsyncadd %s298, %s311
          %p313 = scmp.ne.s32.totalorder 0, %s309
          %s314 = smul.addr %s304, 7
          %s315 = smul.addr %s314, 128
          %s316 = scalar_lea.hbm %s0, %s315
          %s317 = smul.u32 56, %s307
          %s318 = sshll.u32 %s301, 4
          %s319 = int_to_ptr.vmem [resolvable:$true] %s318
          %s320 = sshll.u32 %s317, 4
          %324 = dma.hbm_to_vmem [thread:$0]  (%p313), %s316, %s320, %s319, %s298, 896, 896, 56
        $region44: #{tpu_custom_call.1} parent=39 // pred_fallthru
          _
        // Predicated region
        $region45: #{tpu_custom_call.1} parent=39 // pred_check
          %p325 = pneg %p171
        $region46: #{tpu_custom_call.1} parent=39 // pred_check_branch
          %327 = sbr.rel (%p325) target = $region48
        $region47: #{tpu_custom_call.1} parent=39 // pred_region
          %s328 = sand.u32 %s23, 1
          %s329 = scalar_lea.sflag [#allocation7], %s328
          %s330 = sand.u32 %s161, 1
          %s331 = smul.addr %s330, 128
          %s332 = scalar_lea.vmem [#allocation11], %s331
          %s333 = smul.u32 %s31, %s30
          %s334 = smul.u32 16, %s333
          %s335 = ssub.s32 25, %s334
          %p336 = scmp.lt.s32.totalorder %s335, 16
          %s337 = scalar_select %p336, %s335, 16
          %s338 = smul.u32 64, %s337
          %s339 = smul.u32 %s338, 2
          %s341 = ssub.s32 2048, %s339
          %342 = vsyncadd %s329, %s341
          %p343 = scmp.ne.s32.totalorder 0, %s339
          %s344 = smul.addr %s334, 2
          %s345 = smul.addr %s344, 64
          %s346 = scalar_lea.hbm %s5, %s345
          %s347 = smul.u32 8, %s337
          %s348 = sshll.u32 %s332, 4
          %s349 = int_to_ptr.vmem [resolvable:$true] %s348
          %s350 = sshll.u32 %s347, 4
          %354 = dma.hbm_to_vmem [thread:$0]  (%p343), %s346, %s350, %s349, %s329, 128, 128, 8
        $region48: #{tpu_custom_call.1} parent=39 // pred_fallthru
          _
      $region40: #{tpu_custom_call.1} parent=5 // pred_fallthru
        _
      %p355 = scmp.le.s32.totalorder 1, %s23
      %p356 = scmp.lt.s32.totalorder %s23, 5
      %p357 = pnand %p355, %p356
      %p358 = pneg %p357
      // Predicated region
      $region49: #{tpu_custom_call.1} parent=5 // pred_check
        _
      $region50: #{tpu_custom_call.1} parent=5 // pred_check_branch
        %360 = sbr.rel (%p357) target = $region52
      $region51: #{tpu_custom_call.1} parent=5 // pred_region
        %s361 = ssub.s32 %s23, 1
        %s362 = sand.u32 %s28, 1
        %s363 = scalar_lea.sflag [#allocation7], %s362
        %s364 = sand.u32 %s52, 1
        %s365 = smul.addr %s364, 896
        %s366 = scalar_lea.vmem [#allocation6], %s365
        // Predicated region
        $region53: #{tpu_custom_call.1} parent=51 // pred_check
          %p367 = pneg %p65
        $region54: #{tpu_custom_call.1} parent=51 // pred_check_branch
          %369 = sbr.rel (%p367) target = $region56
        $region55: #{tpu_custom_call.1} parent=51 // pred_region
          %370 = dma.done %s363, 14336
        $region56: #{tpu_custom_call.1} parent=51 // pred_fallthru
          _
        // Predicated region
        $region57: #{tpu_custom_call.1} parent=51 // pred_check
          %p371 = pneg %p86
        $region58: #{tpu_custom_call.1} parent=51 // pred_check_branch
          %373 = sbr.rel (%p371) target = $region60
        $region59: #{tpu_custom_call.1} parent=51 // pred_region
          %374 = dma.done [#allocation10], 25088
        $region60: #{tpu_custom_call.1} parent=51 // pred_fallthru
          _
        %s375 = sand.u32 %s28, 1
        %s376 = scalar_lea.sflag [#allocation7], %s375
        %s377 = sand.u32 %s164, 1
        %s378 = smul.addr %s377, 128
        %s379 = scalar_lea.vmem [#allocation11], %s378
        // Predicated region
        $region61: #{tpu_custom_call.1} parent=51 // pred_check
          %p380 = pneg %p177
        $region62: #{tpu_custom_call.1} parent=51 // pred_check_branch
          %382 = sbr.rel (%p380) target = $region64
        $region63: #{tpu_custom_call.1} parent=51 // pred_region
          %383 = dma.done %s376, 2048
        $region64: #{tpu_custom_call.1} parent=51 // pred_fallthru
          _
        %s384 = sand.u32 %s28, 1
        %s385 = scalar_lea.sflag [#allocation7], %s384
        %s386 = sand.u32 %s52, 1
        %s387 = smul.addr %s386, 896
        %s388 = scalar_lea.vmem [#allocation6], %s387
        %p389 = pneg %p65
        %p390 = pneg %p62
        %p391 = pneg %p86
        %p392 = pneg %p83
        %p393 = pneg %p107
        %p394 = pneg %p104
        %p395 = pneg %p128
        %p396 = pneg %p125
        %p397 = pneg %p149
        %p398 = pneg %p146
        %s399 = sand.u32 %s28, 1
        %s400 = scalar_lea.sflag [#allocation7], %s399
        %s401 = sand.u32 %s164, 1
        %s402 = smul.addr %s401, 128
        %s403 = scalar_lea.vmem [#allocation11], %s402
        %p404 = pneg %p177
        %p405 = pneg %p174
        %p406 = pneg %p198
        %p407 = pneg %p195
        %p408 = pneg %p219
        %p409 = pneg %p216
        %p410 = pneg %p247
        %p411 = pneg %p244
        %s412 = sand.u32 %s234, 1
        %s413 = scalar_lea.sflag [#allocation8], %s412
        %s414 = sand.u32 %s234, 1
        %s415 = scalar_lea.vmem [#allocation12], %s414
        %s416 = ssub.s32 1, %s32
        %s417 = smul.u32 %s33, %s416
        %s418 = smul.u32 16, %s417
        %s419 = ssub.s32 25, %s418
        %p420 = scmp.lt.s32.totalorder %s419, 16
        %s421 = scalar_select %p420, %s419, 16
        %s422 = smul.u32 128, %s421
        %s423 = smul.u32 %s422, 7
        %s424 = smul.u32 %s33, %s32
        %s425 = smul.u32 16, %s424
        %s426 = ssub.s32 25, %s425
        %p427 = scmp.lt.s32.totalorder %s426, 16
        %s428 = scalar_select %p427, %s426, 16
        %s429 = smul.u32 64, %s428
        %s430 = smul.u32 %s429, 2
        %s431 = smul.u32 %s33, %s32
        %s432 = smul.u32 %s33, 128
        %p433 = scmp.eq.s32.totalorder %s32, 0
        // Predicated region
        $region65: #{tpu_custom_call.1} parent=51 // pred_check
          %p434 = pneg %p433
        $region66: #{tpu_custom_call.1} parent=51 // pred_check_branch
          %436 = sbr.rel (%p434) target = $region68
        $region67: #{tpu_custom_call.1} parent=51 // pred_region
          %p437 = scmp.eq.s32.totalorder %s33, 0
          // Predicated region
          $region69: #{tpu_custom_call.1} parent=67 // pred_check
            %p438 = pneg %p437
          $region70: #{tpu_custom_call.1} parent=67 // pred_check_branch
            %440 = sbr.rel (%p438) target = $region72
          $region71: #{tpu_custom_call.1} parent=67 // pred_region
            %v441 = vlaneseq
            %vm442 = vcmp.ge.s32.totalorder %v441, 0
            %vm443 = vcmp.lt.s32.totalorder %v441, 256
            %vm444 = vmand %vm442, %vm443
            %445 = vst.msk [vmem:[#allocation3] sm:$0x3] %vm444, 0.0
            %446 = vst.msk [vmem:[#allocation4] sm:$0x3] %vm444, 0.0
          $region72: #{tpu_custom_call.1} parent=67 // pred_fallthru
            _
          %v447 = vld [vmem:[%s366] sm:$0xff]
          %v448 = vld [vmem:[%s366 + $0x8] sm:$0xff]
          %v449 = vld [vmem:[%s366 + $0x10] sm:$0xff]
          %v450 = vld [vmem:[%s366 + $0x18] sm:$0xff]
          %v451 = vld [vmem:[%s366 + $0x20] sm:$0xff]
          %v452 = vld [vmem:[%s366 + $0x28] sm:$0xff]
          %v453 = vld [vmem:[%s366 + $0x30] sm:$0xff]
          %v454 = vld [vmem:[%s366 + $0x38] sm:$0xff]
          %v455 = vld [vmem:[%s366 + $0x40] sm:$0xff]
          %v456 = vld [vmem:[%s366 + $0x48] sm:$0xff]
          %v457 = vld [vmem:[%s366 + $0x50] sm:$0xff]
          %v458 = vld [vmem:[%s366 + $0x58] sm:$0xff]
          %v459 = vld [vmem:[%s366 + $0x60] sm:$0xff]
          %v460 = vld [vmem:[%s366 + $0x68] sm:$0xff]
          %v461 = vld [vmem:[%s366 + $0x70] sm:$0xff]
          %v462 = vld [vmem:[%s366 + $0x78] sm:$0xff]
          %v463 = vld [vmem:[%s366 + $0x80] sm:$0xff]
          %v464 = vld [vmem:[%s366 + $0x88] sm:$0xff]
          %v465 = vld [vmem:[%s366 + $0x90] sm:$0xff]
          %v466 = vld [vmem:[%s366 + $0x98] sm:$0xff]
          %v467 = vld [vmem:[%s366 + $0xa0] sm:$0xff]
          %v468 = vld [vmem:[%s366 + $0xa8] sm:$0xff]
          %v469 = vld [vmem:[%s366 + $0xb0] sm:$0xff]
          %v470 = vld [vmem:[%s366 + $0xb8] sm:$0xff]
          %v471 = vld [vmem:[%s366 + $0xc0] sm:$0xff]
          %v472 = vld [vmem:[%s366 + $0xc8] sm:$0xff]
          %v473 = vld [vmem:[%s366 + $0xd0] sm:$0xff]
          %v474 = vld [vmem:[%s366 + $0xd8] sm:$0xff]
          %v475 = vld [vmem:[%s366 + $0xe0] sm:$0xff]
          %v476 = vld [vmem:[%s366 + $0xe8] sm:$0xff]
          %v477 = vld [vmem:[%s366 + $0xf0] sm:$0xff]
          %v478 = vld [vmem:[%s366 + $0xf8] sm:$0xff]
          %v479 = vld [vmem:[%s366 + $0x100] sm:$0xff]
          %v480 = vld [vmem:[%s366 + $0x108] sm:$0xff]
          %v481 = vld [vmem:[%s366 + $0x110] sm:$0xff]
          %v482 = vld [vmem:[%s366 + $0x118] sm:$0xff]
          %v483 = vld [vmem:[%s366 + $0x120] sm:$0xff]
          %v484 = vld [vmem:[%s366 + $0x128] sm:$0xff]
          %v485 = vld [vmem:[%s366 + $0x130] sm:$0xff]
          %v486 = vld [vmem:[%s366 + $0x138] sm:$0xff]
          %v487 = vld [vmem:[%s366 + $0x140] sm:$0xff]
          %v488 = vld [vmem:[%s366 + $0x148] sm:$0xff]
          %v489 = vld [vmem:[%s366 + $0x150] sm:$0xff]
          %v490 = vld [vmem:[%s366 + $0x158] sm:$0xff]
          %v491 = vld [vmem:[%s366 + $0x160] sm:$0xff]
          %v492 = vld [vmem:[%s366 + $0x168] sm:$0xff]
          %v493 = vld [vmem:[%s366 + $0x170] sm:$0xff]
          %v494 = vld [vmem:[%s366 + $0x178] sm:$0xff]
          %v495 = vld [vmem:[%s366 + $0x180] sm:$0xff]
          %v496 = vld [vmem:[%s366 + $0x188] sm:$0xff]
          %v497 = vld [vmem:[%s366 + $0x190] sm:$0xff]
          %v498 = vld [vmem:[%s366 + $0x198] sm:$0xff]
          %v499 = vld [vmem:[%s366 + $0x1a0] sm:$0xff]
          %v500 = vld [vmem:[%s366 + $0x1a8] sm:$0xff]
          %v501 = vld [vmem:[%s366 + $0x1b0] sm:$0xff]
          %v502 = vld [vmem:[%s366 + $0x1b8] sm:$0xff]
          %v503 = vld [vmem:[%s366 + $0x1c0] sm:$0xff]
          %v504 = vld [vmem:[%s366 + $0x1c8] sm:$0xff]
          %v505 = vld [vmem:[%s366 + $0x1d0] sm:$0xff]
          %v506 = vld [vmem:[%s366 + $0x1d8] sm:$0xff]
          %v507 = vld [vmem:[%s366 + $0x1e0] sm:$0xff]
          %v508 = vld [vmem:[%s366 + $0x1e8] sm:$0xff]
          %v509 = vld [vmem:[%s366 + $0x1f0] sm:$0xff]
          %v510 = vld [vmem:[%s366 + $0x1f8] sm:$0xff]
          %v511 = vld [vmem:[%s366 + $0x200] sm:$0xff]
          %v512 = vld [vmem:[%s366 + $0x208] sm:$0xff]
          %v513 = vld [vmem:[%s366 + $0x210] sm:$0xff]
          %v514 = vld [vmem:[%s366 + $0x218] sm:$0xff]
          %v515 = vld [vmem:[%s366 + $0x220] sm:$0xff]
          %v516 = vld [vmem:[%s366 + $0x228] sm:$0xff]
          %v517 = vld [vmem:[%s366 + $0x230] sm:$0xff]
          %v518 = vld [vmem:[%s366 + $0x238] sm:$0xff]
          %v519 = vld [vmem:[%s366 + $0x240] sm:$0xff]
          %v520 = vld [vmem:[%s366 + $0x248] sm:$0xff]
          %v521 = vld [vmem:[%s366 + $0x250] sm:$0xff]
          %v522 = vld [vmem:[%s366 + $0x258] sm:$0xff]
          %v523 = vld [vmem:[%s366 + $0x260] sm:$0xff]
          %v524 = vld [vmem:[%s366 + $0x268] sm:$0xff]
          %v525 = vld [vmem:[%s366 + $0x270] sm:$0xff]
          %v526 = vld [vmem:[%s366 + $0x278] sm:$0xff]
          %v527 = vld [vmem:[%s366 + $0x280] sm:$0xff]
          %v528 = vld [vmem:[%s366 + $0x288] sm:$0xff]
          %v529 = vld [vmem:[%s366 + $0x290] sm:$0xff]
          %v530 = vld [vmem:[%s366 + $0x298] sm:$0xff]
          %v531 = vld [vmem:[%s366 + $0x2a0] sm:$0xff]
          %v532 = vld [vmem:[%s366 + $0x2a8] sm:$0xff]
          %v533 = vld [vmem:[%s366 + $0x2b0] sm:$0xff]
          %v534 = vld [vmem:[%s366 + $0x2b8] sm:$0xff]
          %v535 = vld [vmem:[%s366 + $0x2c0] sm:$0xff]
          %v536 = vld [vmem:[%s366 + $0x2c8] sm:$0xff]
          %v537 = vld [vmem:[%s366 + $0x2d0] sm:$0xff]
          %v538 = vld [vmem:[%s366 + $0x2d8] sm:$0xff]
          %v539 = vld [vmem:[%s366 + $0x2e0] sm:$0xff]
          %v540 = vld [vmem:[%s366 + $0x2e8] sm:$0xff]
          %v541 = vld [vmem:[%s366 + $0x2f0] sm:$0xff]
          %v542 = vld [vmem:[%s366 + $0x2f8] sm:$0xff]
          %v543 = vld [vmem:[%s366 + $0x300] sm:$0xff]
          %v544 = vld [vmem:[%s366 + $0x308] sm:$0xff]
          %v545 = vld [vmem:[%s366 + $0x310] sm:$0xff]
          %v546 = vld [vmem:[%s366 + $0x318] sm:$0xff]
          %v547 = vld [vmem:[%s366 + $0x320] sm:$0xff]
          %v548 = vld [vmem:[%s366 + $0x328] sm:$0xff]
          %v549 = vld [vmem:[%s366 + $0x330] sm:$0xff]
          %v550 = vld [vmem:[%s366 + $0x338] sm:$0xff]
          %v551 = vld [vmem:[%s366 + $0x340] sm:$0xff]
          %v552 = vld [vmem:[%s366 + $0x348] sm:$0xff]
          %v553 = vld [vmem:[%s366 + $0x350] sm:$0xff]
          %v554 = vld [vmem:[%s366 + $0x358] sm:$0xff]
          %v555 = vld [vmem:[%s366 + $0x360] sm:$0xff]
          %v556 = vld [vmem:[%s366 + $0x368] sm:$0xff]
          %v557 = vld [vmem:[%s366 + $0x370] sm:$0xff]
          %v558 = vld [vmem:[%s366 + $0x378] sm:$0xff]
          %v559 = vld [vmem:[#allocation9] sm:$0xff]
          %v560 = vld [vmem:[#allocation9 + $0x8] sm:$0xff]
          %v561 = vld [vmem:[#allocation9 + $0x10] sm:$0xff]
          %v562 = vld [vmem:[#allocation9 + $0x18] sm:$0xff]
          %v563 = vld [vmem:[#allocation9 + $0x20] sm:$0xff]
          %v564 = vld [vmem:[#allocation9 + $0x28] sm:$0xff]
          %v565 = vld [vmem:[#allocation9 + $0x30] sm:$0xff]
          %v566 = vld [vmem:[#allocation9 + $0x38] sm:$0xff]
          %v567 = vld [vmem:[#allocation9 + $0x40] sm:$0xff]
          %v568 = vld [vmem:[#allocation9 + $0x48] sm:$0xff]
          %v569 = vld [vmem:[#allocation9 + $0x50] sm:$0xff]
          %v570 = vld [vmem:[#allocation9 + $0x58] sm:$0xff]
          %v571 = vld [vmem:[#allocation9 + $0x60] sm:$0xff]
          %v572 = vld [vmem:[#allocation9 + $0x68] sm:$0xff]
          %v573 = vld [vmem:[#allocation9 + $0x70] sm:$0xff]
          %v574 = vld [vmem:[#allocation9 + $0x78] sm:$0xff]
          %v575 = vld [vmem:[#allocation9 + $0x80] sm:$0xff]
          %v576 = vld [vmem:[#allocation9 + $0x88] sm:$0xff]
          %v577 = vld [vmem:[#allocation9 + $0x90] sm:$0xff]
          %v578 = vld [vmem:[#allocation9 + $0x98] sm:$0xff]
          %v579 = vld [vmem:[#allocation9 + $0xa0] sm:$0xff]
          %v580 = vld [vmem:[#allocation9 + $0xa8] sm:$0xff]
          %v581 = vld [vmem:[#allocation9 + $0xb0] sm:$0xff]
          %v582 = vld [vmem:[#allocation9 + $0xb8] sm:$0xff]
          %v583 = vld [vmem:[#allocation9 + $0xc0] sm:$0xff]
          %v584 = vld [vmem:[#allocation9 + $0xc8] sm:$0xff]
          %v585 = vld [vmem:[#allocation9 + $0xd0] sm:$0xff]
          %v586 = vld [vmem:[#allocation9 + $0xd8] sm:$0xff]
          %v587 = vld [vmem:[#allocation9 + $0xe0] sm:$0xff]
          %v588 = vld [vmem:[#allocation9 + $0xe8] sm:$0xff]
          %v589 = vld [vmem:[#allocation9 + $0xf0] sm:$0xff]
          %v590 = vld [vmem:[#allocation9 + $0xf8] sm:$0xff]
          %v591 = vld [vmem:[#allocation9 + $0x100] sm:$0xff]
          %v592 = vld [vmem:[#allocation9 + $0x108] sm:$0xff]
          %v593 = vld [vmem:[#allocation9 + $0x110] sm:$0xff]
          %v594 = vld [vmem:[#allocation9 + $0x118] sm:$0xff]
          %v595 = vld [vmem:[#allocation9 + $0x120] sm:$0xff]
          %v596 = vld [vmem:[#allocation9 + $0x128] sm:$0xff]
          %v597 = vld [vmem:[#allocation9 + $0x130] sm:$0xff]
          %v598 = vld [vmem:[#allocation9 + $0x138] sm:$0xff]
          %v599 = vld [vmem:[#allocation9 + $0x140] sm:$0xff]
          %v600 = vld [vmem:[#allocation9 + $0x148] sm:$0xff]
          %v601 = vld [vmem:[#allocation9 + $0x150] sm:$0xff]
          %v602 = vld [vmem:[#allocation9 + $0x158] sm:$0xff]
          %v603 = vld [vmem:[#allocation9 + $0x160] sm:$0xff]
          %v604 = vld [vmem:[#allocation9 + $0x168] sm:$0xff]
          %v605 = vld [vmem:[#allocation9 + $0x170] sm:$0xff]
          %v606 = vld [vmem:[#allocation9 + $0x178] sm:$0xff]
          %v607 = vld [vmem:[#allocation9 + $0x180] sm:$0xff]
          %v608 = vld [vmem:[#allocation9 + $0x188] sm:$0xff]
          %v609 = vld [vmem:[#allocation9 + $0x190] sm:$0xff]
          %v610 = vld [vmem:[#allocation9 + $0x198] sm:$0xff]
          %v611 = vld [vmem:[#allocation9 + $0x1a0] sm:$0xff]
          %v612 = vld [vmem:[#allocation9 + $0x1a8] sm:$0xff]
          %v613 = vld [vmem:[#allocation9 + $0x1b0] sm:$0xff]
          %v614 = vld [vmem:[#allocation9 + $0x1b8] sm:$0xff]
          %v615 = vld [vmem:[#allocation9 + $0x1c0] sm:$0xff]
          %v616 = vld [vmem:[#allocation9 + $0x1c8] sm:$0xff]
          %v617 = vld [vmem:[#allocation9 + $0x1d0] sm:$0xff]
          %v618 = vld [vmem:[#allocation9 + $0x1d8] sm:$0xff]
          %v619 = vld [vmem:[#allocation9 + $0x1e0] sm:$0xff]
          %v620 = vld [vmem:[#allocation9 + $0x1e8] sm:$0xff]
          %v621 = vld [vmem:[#allocation9 + $0x1f0] sm:$0xff]
          %v622 = vld [vmem:[#allocation9 + $0x1f8] sm:$0xff]
          %v623 = vld [vmem:[#allocation9 + $0x200] sm:$0xff]
          %v624 = vld [vmem:[#allocation9 + $0x208] sm:$0xff]
          %v625 = vld [vmem:[#allocation9 + $0x210] sm:$0xff]
          %v626 = vld [vmem:[#allocation9 + $0x218] sm:$0xff]
          %v627 = vld [vmem:[#allocation9 + $0x220] sm:$0xff]
          %v628 = vld [vmem:[#allocation9 + $0x228] sm:$0xff]
          %v629 = vld [vmem:[#allocation9 + $0x230] sm:$0xff]
          %v630 = vld [vmem:[#allocation9 + $0x238] sm:$0xff]
          %v631 = vld [vmem:[#allocation9 + $0x240] sm:$0xff]
          %v632 = vld [vmem:[#allocation9 + $0x248] sm:$0xff]
          %v633 = vld [vmem:[#allocation9 + $0x250] sm:$0xff]
          %v634 = vld [vmem:[#allocation9 + $0x258] sm:$0xff]
          %v635 = vld [vmem:[#allocation9 + $0x260] sm:$0xff]
          %v636 = vld [vmem:[#allocation9 + $0x268] sm:$0xff]
          %v637 = vld [vmem:[#allocation9 + $0x270] sm:$0xff]
          %v638 = vld [vmem:[#allocation9 + $0x278] sm:$0xff]
          %v639 = vld [vmem:[#allocation9 + $0x280] sm:$0xff]
          %v640 = vld [vmem:[#allocation9 + $0x288] sm:$0xff]
          %v641 = vld [vmem:[#allocation9 + $0x290] sm:$0xff]
          %v642 = vld [vmem:[#allocation9 + $0x298] sm:$0xff]
          %v643 = vld [vmem:[#allocation9 + $0x2a0] sm:$0xff]
          %v644 = vld [vmem:[#allocation9 + $0x2a8] sm:$0xff]
          %v645 = vld [vmem:[#allocation9 + $0x2b0] sm:$0xff]
          %v646 = vld [vmem:[#allocation9 + $0x2b8] sm:$0xff]
          %v647 = vld [vmem:[#allocation9 + $0x2c0] sm:$0xff]
          %v648 = vld [vmem:[#allocation9 + $0x2c8] sm:$0xff]
          %v649 = vld [vmem:[#allocation9 + $0x2d0] sm:$0xff]
          %v650 = vld [vmem:[#allocation9 + $0x2d8] sm:$0xff]
          %v651 = vld [vmem:[#allocation9 + $0x2e0] sm:$0xff]
          %v652 = vld [vmem:[#allocation9 + $0x2e8] sm:$0xff]
          %v653 = vld [vmem:[#allocation9 + $0x2f0] sm:$0xff]
          %v654 = vld [vmem:[#allocation9 + $0x2f8] sm:$0xff]
          %v655 = vld [vmem:[#allocation9 + $0x300] sm:$0xff]
          %v656 = vld [vmem:[#allocation9 + $0x308] sm:$0xff]
          %v657 = vld [vmem:[#allocation9 + $0x310] sm:$0xff]
          %v658 = vld [vmem:[#allocation9 + $0x318] sm:$0xff]
          %v659 = vld [vmem:[#allocation9 + $0x320] sm:$0xff]
          %v660 = vld [vmem:[#allocation9 + $0x328] sm:$0xff]
          %v661 = vld [vmem:[#allocation9 + $0x330] sm:$0xff]
          %v662 = vld [vmem:[#allocation9 + $0x338] sm:$0xff]
          %v663 = vld [vmem:[#allocation9 + $0x340] sm:$0xff]
          %v664 = vld [vmem:[#allocation9 + $0x348] sm:$0xff]
          %v665 = vld [vmem:[#allocation9 + $0x350] sm:$0xff]
          %v666 = vld [vmem:[#allocation9 + $0x358] sm:$0xff]
          %v667 = vld [vmem:[#allocation9 + $0x360] sm:$0xff]
          %v668 = vld [vmem:[#allocation9 + $0x368] sm:$0xff]
          %v669 = vld [vmem:[#allocation9 + $0x370] sm:$0xff]
          %v670 = vld [vmem:[#allocation9 + $0x378] sm:$0xff]
          %v671 = vld [vmem:[#allocation9 + $0x380] sm:$0xff]
          %v672 = vld [vmem:[#allocation9 + $0x388] sm:$0xff]
          %v673 = vld [vmem:[#allocation9 + $0x390] sm:$0xff]
          %v674 = vld [vmem:[#allocation9 + $0x398] sm:$0xff]
          %v675 = vld [vmem:[#allocation9 + $0x3a0] sm:$0xff]
          %v676 = vld [vmem:[#allocation9 + $0x3a8] sm:$0xff]
          %v677 = vld [vmem:[#allocation9 + $0x3b0] sm:$0xff]
          %v678 = vld [vmem:[#allocation9 + $0x3b8] sm:$0xff]
          %v679 = vld [vmem:[#allocation9 + $0x3c0] sm:$0xff]
          %v680 = vld [vmem:[#allocation9 + $0x3c8] sm:$0xff]
          %v681 = vld [vmem:[#allocation9 + $0x3d0] sm:$0xff]
          %v682 = vld [vmem:[#allocation9 + $0x3d8] sm:$0xff]
          %v683 = vld [vmem:[#allocation9 + $0x3e0] sm:$0xff]
          %v684 = vld [vmem:[#allocation9 + $0x3e8] sm:$0xff]
          %v685 = vld [vmem:[#allocation9 + $0x3f0] sm:$0xff]
          %v686 = vld [vmem:[#allocation9 + $0x3f8] sm:$0xff]
          %v687 = vld [vmem:[#allocation9 + $0x400] sm:$0xff]
          %v688 = vld [vmem:[#allocation9 + $0x408] sm:$0xff]
          %v689 = vld [vmem:[#allocation9 + $0x410] sm:$0xff]
          %v690 = vld [vmem:[#allocation9 + $0x418] sm:$0xff]
          %v691 = vld [vmem:[#allocation9 + $0x420] sm:$0xff]
          %v692 = vld [vmem:[#allocation9 + $0x428] sm:$0xff]
          %v693 = vld [vmem:[#allocation9 + $0x430] sm:$0xff]
          %v694 = vld [vmem:[#allocation9 + $0x438] sm:$0xff]
          %v695 = vld [vmem:[#allocation9 + $0x440] sm:$0xff]
          %v696 = vld [vmem:[#allocation9 + $0x448] sm:$0xff]
          %v697 = vld [vmem:[#allocation9 + $0x450] sm:$0xff]
          %v698 = vld [vmem:[#allocation9 + $0x458] sm:$0xff]
          %v699 = vld [vmem:[#allocation9 + $0x460] sm:$0xff]
          %v700 = vld [vmem:[#allocation9 + $0x468] sm:$0xff]
          %v701 = vld [vmem:[#allocation9 + $0x470] sm:$0xff]
          %v702 = vld [vmem:[#allocation9 + $0x478] sm:$0xff]
          %v703 = vld [vmem:[#allocation9 + $0x480] sm:$0xff]
          %v704 = vld [vmem:[#allocation9 + $0x488] sm:$0xff]
          %v705 = vld [vmem:[#allocation9 + $0x490] sm:$0xff]
          %v706 = vld [vmem:[#allocation9 + $0x498] sm:$0xff]
          %v707 = vld [vmem:[#allocation9 + $0x4a0] sm:$0xff]
          %v708 = vld [vmem:[#allocation9 + $0x4a8] sm:$0xff]
          %v709 = vld [vmem:[#allocation9 + $0x4b0] sm:$0xff]
          %v710 = vld [vmem:[#allocation9 + $0x4b8] sm:$0xff]
          %v711 = vld [vmem:[#allocation9 + $0x4c0] sm:$0xff]
          %v712 = vld [vmem:[#allocation9 + $0x4c8] sm:$0xff]
          %v713 = vld [vmem:[#allocation9 + $0x4d0] sm:$0xff]
          %v714 = vld [vmem:[#allocation9 + $0x4d8] sm:$0xff]
          %v715 = vld [vmem:[#allocation9 + $0x4e0] sm:$0xff]
          %v716 = vld [vmem:[#allocation9 + $0x4e8] sm:$0xff]
          %v717 = vld [vmem:[#allocation9 + $0x4f0] sm:$0xff]
          %v718 = vld [vmem:[#allocation9 + $0x4f8] sm:$0xff]
          %v719 = vld [vmem:[#allocation9 + $0x500] sm:$0xff]
          %v720 = vld [vmem:[#allocation9 + $0x508] sm:$0xff]
          %v721 = vld [vmem:[#allocation9 + $0x510] sm:$0xff]
          %v722 = vld [vmem:[#allocation9 + $0x518] sm:$0xff]
          %v723 = vld [vmem:[#allocation9 + $0x520] sm:$0xff]
          %v724 = vld [vmem:[#allocation9 + $0x528] sm:$0xff]
          %v725 = vld [vmem:[#allocation9 + $0x530] sm:$0xff]
          %v726 = vld [vmem:[#allocation9 + $0x538] sm:$0xff]
          %v727 = vld [vmem:[#allocation9 + $0x540] sm:$0xff]
          %v728 = vld [vmem:[#allocation9 + $0x548] sm:$0xff]
          %v729 = vld [vmem:[#allocation9 + $0x550] sm:$0xff]
          %v730 = vld [vmem:[#allocation9 + $0x558] sm:$0xff]
          %v731 = vld [vmem:[#allocation9 + $0x560] sm:$0xff]
          %v732 = vld [vmem:[#allocation9 + $0x568] sm:$0xff]
          %v733 = vld [vmem:[#allocation9 + $0x570] sm:$0xff]
          %v734 = vld [vmem:[#allocation9 + $0x578] sm:$0xff]
          %v735 = vld [vmem:[#allocation9 + $0x580] sm:$0xff]
          %v736 = vld [vmem:[#allocation9 + $0x588] sm:$0xff]
          %v737 = vld [vmem:[#allocation9 + $0x590] sm:$0xff]
          %v738 = vld [vmem:[#allocation9 + $0x598] sm:$0xff]
          %v739 = vld [vmem:[#allocation9 + $0x5a0] sm:$0xff]
          %v740 = vld [vmem:[#allocation9 + $0x5a8] sm:$0xff]
          %v741 = vld [vmem:[#allocation9 + $0x5b0] sm:$0xff]
          %v742 = vld [vmem:[#allocation9 + $0x5b8] sm:$0xff]
          %v743 = vld [vmem:[#allocation9 + $0x5c0] sm:$0xff]
          %v744 = vld [vmem:[#allocation9 + $0x5c8] sm:$0xff]
          %v745 = vld [vmem:[#allocation9 + $0x5d0] sm:$0xff]
          %v746 = vld [vmem:[#allocation9 + $0x5d8] sm:$0xff]
          %v747 = vld [vmem:[#allocation9 + $0x5e0] sm:$0xff]
          %v748 = vld [vmem:[#allocation9 + $0x5e8] sm:$0xff]
          %v749 = vld [vmem:[#allocation9 + $0x5f0] sm:$0xff]
          %v750 = vld [vmem:[#allocation9 + $0x5f8] sm:$0xff]
          %v751 = vld [vmem:[#allocation9 + $0x600] sm:$0xff]
          %v752 = vld [vmem:[#allocation9 + $0x608] sm:$0xff]
          %v753 = vld [vmem:[#allocation9 + $0x610] sm:$0xff]
          %v754 = vld [vmem:[#allocation9 + $0x618] sm:$0xff]
          %v755 = vld [vmem:[%s2] sm:$0x3]
          %v757 = vlaneseq
          %v758 = vshrl.u32 %v757, 7
          %v759 = vsub.s32 0, %v758
          %v760 = vrot.slane %v755, %v759
          %v761 = vlaneseq
          %v762 = vshrl.u32 %v761, 7
          %v763 = vsub.s32 1, %v762
          %v764 = vrot.slane %v755, %v763
          %vm767 = vcmask 130048
          %v769 = vsel %vm767, %v453, 0
          %v772 = vsel %vm767, %v460, 0
          %v775 = vsel %vm767, %v467, 0
          %v778 = vsel %vm767, %v474, 0
          %v781 = vsel %vm767, %v481, 0
          %v784 = vsel %vm767, %v488, 0
          %v787 = vsel %vm767, %v495, 0
          %v790 = vsel %vm767, %v502, 0
          %v793 = vsel %vm767, %v509, 0
          %v796 = vsel %vm767, %v516, 0
          %v799 = vsel %vm767, %v523, 0
          %v802 = vsel %vm767, %v530, 0
          %v805 = vsel %vm767, %v537, 0
          %v808 = vsel %vm767, %v544, 0
          %v811 = vsel %vm767, %v551, 0
          %v814 = vsel %vm767, %v558, 0
          %816 = vmatprep.subr.mxu0 %v560
          %817 = vmatpush1.msra.mxu0 %v559
          %818 = vmatprep.subr.mxu0 %v562
          %819 = vmatpush1.msra.mxu0 %v561
          %820 = vmatprep.subr.mxu0 %v564
          %821 = vmatpush1.msra.mxu0 %v563
          %822 = vmatprep.subr.mxu0 %v566
          %823 = vmatpush1.msra.mxu0 %v565
          %824 = vmatprep.subr.mxu0 %v568
          %825 = vmatpush1.msra.mxu0 %v567
          %826 = vmatprep.subr.mxu0 %v570
          %827 = vmatpush1.msra.mxu0 %v569
          %828 = vmatprep.subr.mxu0 %v572
          %829 = vmatpush1.msra.mxu0 %v571
          %830 = vmatprep.subr.mxu0 %v574
          %831 = vmatpush1.msra.mxu0 %v573
          %832 = vmatprep.subr.mxu0 %v576
          %833 = vmatpush1.msra.mxu0 %v575
          %834 = vmatprep.subr.mxu0 %v578
          %835 = vmatpush1.msra.mxu0 %v577
          %836 = vmatprep.subr.mxu0 %v580
          %837 = vmatpush1.msra.mxu0 %v579
          %838 = vmatprep.subr.mxu0 %v582
          %839 = vmatpush1.msra.mxu0 %v581
          %840 = vmatprep.subr.mxu0 %v584
          %841 = vmatpush1.msra.mxu0 %v583
          %842 = vmatprep.subr.mxu0 %v586
          %843 = vmatpush1.msra.mxu0 %v585
          %844 = vmatprep.subr.mxu0 %v588
          %845 = vmatpush1.msra.mxu0 %v587
          %846 = vmatprep.subr.mxu0 %v590
          %847 = vmatpush1.msra.mxu0 %v589
          %848 = vmatprep.subr.mxu0 %v592
          %849 = vmatpush1.msra.mxu0 %v591
          %850 = vmatprep.subr.mxu0 %v594
          %851 = vmatpush1.msra.mxu0 %v593
          %852 = vmatprep.subr.mxu0 %v596
          %853 = vmatpush1.msra.mxu0 %v595
          %854 = vmatprep.subr.mxu0 %v598
          %855 = vmatpush1.msra.mxu0 %v597
          %856 = vmatprep.subr.mxu0 %v600
          %857 = vmatpush1.msra.mxu0 %v599
          %858 = vmatprep.subr.mxu0 %v602
          %859 = vmatpush1.msra.mxu0 %v601
          %860 = vmatprep.subr.mxu0 %v604
          %861 = vmatpush1.msra.mxu0 %v603
          %862 = vmatprep.subr.mxu0 %v606
          %863 = vmatpush1.msra.mxu0 %v605
          %864 = vmatprep.subr.mxu0 %v608
          %865 = vmatpush1.msra.mxu0 %v607
          %866 = vmatprep.subr.mxu0 %v610
          %867 = vmatpush1.msra.mxu0 %v609
          %868 = vmatprep.subr.mxu0 %v612
          %869 = vmatpush1.msra.mxu0 %v611
          %870 = vmatprep.subr.mxu0 %v614
          %871 = vmatpush1.msra.mxu0 %v613
          %872 = vmatprep.subr.mxu0 %v616
          %873 = vmatpush1.msra.mxu0 %v615
          %874 = vmatprep.subr.mxu0 %v618
          %875 = vmatpush1.msra.mxu0 %v617
          %876 = vmatprep.subr.mxu0 %v620
          %877 = vmatpush1.msra.mxu0 %v619
          %878 = vmatprep.subr.mxu0 %v622
          %879 = vmatpush1.msra.mxu0 %v621
          %880 = vmatprep.mubr.f32.mxu0 %v448
          %881 = vmatmul.mubr.f32.gmra.mrb[0].mxu0 %v447
          %v882 = vpop.f32.mrb[0].mxu0
          %v883 = vadd.f32 %v760, %v882
          %v884 = vpop.f32.mrb[0].mxu0
          %v885 = vadd.f32 %v764, %v884
          %886 = vmatprep.mubr.f32.mxu0 %v455
          %887 = vmatmul.mubr.f32.gmra.mrb[0].mxu0 %v454
          %v888 = vpop.f32.mrb[0].mxu0
          %v889 = vadd.f32 %v760, %v888
          %v890 = vpop.f32.mrb[0].mxu0
          %v891 = vadd.f32 %v764, %v890
          %892 = vmatprep.mubr.f32.mxu0 %v462
          %893 = vmatmul.mubr.f32.gmra.mrb[0].mxu0 %v461
          %v894 = vpop.f32.mrb[0].mxu0
          %v895 = vadd.f32 %v760, %v894
          %v896 = vpop.f32.mrb[0].mxu0
          %v897 = vadd.f32 %v764, %v896
          %898 = vmatprep.mubr.f32.mxu0 %v469
          %899 = vmatmul.mubr.f32.gmra.mrb[0].mxu0 %v468
          %v900 = vpop.f32.mrb[0].mxu0
          %v901 = vadd.f32 %v760, %v900
          %v902 = vpop.f32.mrb[0].mxu0
          %v903 = vadd.f32 %v764, %v902
          %904 = vmatprep.mubr.f32.mxu0 %v476
          %905 = vmatmul.mubr.f32.gmra.mrb[0].mxu0 %v475
          %v906 = vpop.f32.mrb[0].mxu0
          %v907 = vadd.f32 %v760, %v906
          %v908 = vpop.f32.mrb[0].mxu0
          %v909 = vadd.f32 %v764, %v908
          %910 = vmatprep.mubr.f32.mxu0 %v483
          %911 = vmatmul.mubr.f32.gmra.mrb[0].mxu0 %v482
          %v912 = vpop.f32.mrb[0].mxu0
          %v913 = vadd.f32 %v760, %v912
          %v914 = vpop.f32.mrb[0].mxu0
          %v915 = vadd.f32 %v764, %v914
          %916 = vmatprep.mubr.f32.mxu0 %v490
          %917 = vmatmul.mubr.f32.gmra.mrb[0].mxu0 %v489
          %v918 = vpop.f32.mrb[0].mxu0
          %v919 = vadd.f32 %v760, %v918
          %v920 = vpop.f32.mrb[0].mxu0
          %v921 = vadd.f32 %v764, %v920
          %922 = vmatprep.mubr.f32.mxu0 %v497
          %923 = vmatmul.mubr.f32.gmra.mrb[0].mxu0 %v496
          %v924 = vpop.f32.mrb[0].mxu0
          %v925 = vadd.f32 %v760, %v924
          %v926 = vpop.f32.mrb[0].mxu0
          %v927 = vadd.f32 %v764, %v926
          %928 = vmatprep.mubr.f32.mxu0 %v504
          %929 = vmatmul.mubr.f32.gmra.mrb[0].mxu0 %v503
          %v930 = vpop.f32.mrb[0].mxu0
          %v931 = vadd.f32 %v760, %v930
          %v932 = vpop.f32.mrb[0].mxu0
          %v933 = vadd.f32 %v764, %v932
          %934 = vmatprep.mubr.f32.mxu0 %v511
          %935 = vmatmul.mubr.f32.gmra.mrb[0].mxu0 %v510
          %v936 = vpop.f32.mrb[0].mxu0
          %v937 = vadd.f32 %v760, %v936
          %v938 = vpop.f32.mrb[0].mxu0
          %v939 = vadd.f32 %v764, %v938
          %940 = vmatprep.mubr.f32.mxu0 %v518
          %941 = vmatmul.mubr.f32.gmra.mrb[0].mxu0 %v517
          %v942 = vpop.f32.mrb[0].mxu0
          %v943 = vadd.f32 %v760, %v942
          %v944 = vpop.f32.mrb[0].mxu0
          %v945 = vadd.f32 %v764, %v944
          %946 = vmatprep.mubr.f32.mxu0 %v525
          %947 = vmatmul.mubr.f32.gmra.mrb[0].mxu0 %v524
          %v948 = vpop.f32.mrb[0].mxu0
          %v949 = vadd.f32 %v760, %v948
          %v950 = vpop.f32.mrb[0].mxu0
          %v951 = vadd.f32 %v764, %v950
          %952 = vmatprep.mubr.f32.mxu0 %v532
          %953 = vmatmul.mubr.f32.gmra.mrb[0].mxu0 %v531
          %v954 = vpop.f32.mrb[0].mxu0
          %v955 = vadd.f32 %v760, %v954
          %v956 = vpop.f32.mrb[0].mxu0
          %v957 = vadd.f32 %v764, %v956
          %958 = vmatprep.mubr.f32.mxu0 %v539
          %959 = vmatmul.mubr.f32.gmra.mrb[0].mxu0 %v538
          %v960 = vpop.f32.mrb[0].mxu0
          %v961 = vadd.f32 %v760, %v960
          %v962 = vpop.f32.mrb[0].mxu0
          %v963 = vadd.f32 %v764, %v962
          %964 = vmatprep.mubr.f32.mxu0 %v546
          %965 = vmatmul.mubr.f32.gmra.mrb[0].mxu0 %v545
          %v966 = vpop.f32.mrb[0].mxu0
          %v967 = vadd.f32 %v760, %v966
          %v968 = vpop.f32.mrb[0].mxu0
          %v969 = vadd.f32 %v764, %v968
          %970 = vmatprep.mubr.f32.mxu0 %v553
          %971 = vmatmul.mubr.f32.gmra.mrb[0].mxu0 %v552
          %v972 = vpop.f32.mrb[0].mxu0
          %v973 = vadd.f32 %v760, %v972
          %v974 = vpop.f32.mrb[0].mxu0
          %v975 = vadd.f32 %v764, %v974
          %976 = vdwg.mxu0
          %977 = vmatprep.subr.mxu0 %v624
          %978 = vmatpush1.msra.mxu0 %v623
          %979 = vmatprep.subr.mxu0 %v626
          %980 = vmatpush1.msra.mxu0 %v625
          %981 = vmatprep.subr.mxu0 %v628
          %982 = vmatpush1.msra.mxu0 %v627
          %983 = vmatprep.subr.mxu0 %v630
          %984 = vmatpush1.msra.mxu0 %v629
          %985 = vmatprep.subr.mxu0 %v632
          %986 = vmatpush1.msra.mxu0 %v631
          %987 = vmatprep.subr.mxu0 %v634
          %988 = vmatpush1.msra.mxu0 %v633
          %989 = vmatprep.subr.mxu0 %v636
          %990 = vmatpush1.msra.mxu0 %v635
          %991 = vmatprep.subr.mxu0 %v638
          %992 = vmatpush1.msra.mxu0 %v637
          %993 = vmatprep.subr.mxu0 %v640
          %994 = vmatpush1.msra.mxu0 %v639
          %995 = vmatprep.subr.mxu0 %v642
          %996 = vmatpush1.msra.mxu0 %v641
          %997 = vmatprep.subr.mxu0 %v644
          %998 = vmatpush1.msra.mxu0 %v643
          %999 = vmatprep.subr.mxu0 %v646
          %1000 = vmatpush1.msra.mxu0 %v645
          %1001 = vmatprep.subr.mxu0 %v648
          %1002 = vmatpush1.msra.mxu0 %v647
          %1003 = vmatprep.subr.mxu0 %v650
          %1004 = vmatpush1.msra.mxu0 %v649
          %1005 = vmatprep.subr.mxu0 %v652
          %1006 = vmatpush1.msra.mxu0 %v651
          %1007 = vmatprep.subr.mxu0 %v654
          %1008 = vmatpush1.msra.mxu0 %v653
          %1009 = vmatprep.subr.mxu0 %v656
          %1010 = vmatpush1.msra.mxu0 %v655
          %1011 = vmatprep.subr.mxu0 %v658
          %1012 = vmatpush1.msra.mxu0 %v657
          %1013 = vmatprep.subr.mxu0 %v660
          %1014 = vmatpush1.msra.mxu0 %v659
          %1015 = vmatprep.subr.mxu0 %v662
          %1016 = vmatpush1.msra.mxu0 %v661
          %1017 = vmatprep.subr.mxu0 %v664
          %1018 = vmatpush1.msra.mxu0 %v663
          %1019 = vmatprep.subr.mxu0 %v666
          %1020 = vmatpush1.msra.mxu0 %v665
          %1021 = vmatprep.subr.mxu0 %v668
          %1022 = vmatpush1.msra.mxu0 %v667
          %1023 = vmatprep.subr.mxu0 %v670
          %1024 = vmatpush1.msra.mxu0 %v669
          %1025 = vmatprep.subr.mxu0 %v672
          %1026 = vmatpush1.msra.mxu0 %v671
          %1027 = vmatprep.subr.mxu0 %v674
          %1028 = vmatpush1.msra.mxu0 %v673
          %1029 = vmatprep.subr.mxu0 %v676
          %1030 = vmatpush1.msra.mxu0 %v675
          %1031 = vmatprep.subr.mxu0 %v678
          %1032 = vmatpush1.msra.mxu0 %v677
          %1033 = vmatprep.subr.mxu0 %v680
          %1034 = vmatpush1.msra.mxu0 %v679
          %1035 = vmatprep.subr.mxu0 %v682
          %1036 = vmatpush1.msra.mxu0 %v681
          %1037 = vmatprep.subr.mxu0 %v684
          %1038 = vmatpush1.msra.mxu0 %v683
          %1039 = vmatprep.subr.mxu0 %v686
          %1040 = vmatpush1.msra.mxu0 %v685
          %1041 = vmatprep.mubr.f32.mxu0 %v450
          %1042 = vmatmul.mubr.f32.gmra.mrb[0].mxu0 %v449
          %v1043 = vpop.f32.mrb[0].mxu0
          %v1044 = vadd.f32 %v883, %v1043
          %v1045 = vpop.f32.mrb[0].mxu0
          %v1046 = vadd.f32 %v885, %v1045
          %1047 = vmatprep.mubr.f32.mxu0 %v457
          %1048 = vmatmul.mubr.f32.gmra.mrb[0].mxu0 %v456
          %v1049 = vpop.f32.mrb[0].mxu0
          %v1050 = vadd.f32 %v889, %v1049
          %v1051 = vpop.f32.mrb[0].mxu0
          %v1052 = vadd.f32 %v891, %v1051
          %1053 = vmatprep.mubr.f32.mxu0 %v464
          %1054 = vmatmul.mubr.f32.gmra.mrb[0].mxu0 %v463
          %v1055 = vpop.f32.mrb[0].mxu0
          %v1056 = vadd.f32 %v895, %v1055
          %v1057 = vpop.f32.mrb[0].mxu0
          %v1058 = vadd.f32 %v897, %v1057
          %1059 = vmatprep.mubr.f32.mxu0 %v471
          %1060 = vmatmul.mubr.f32.gmra.mrb[0].mxu0 %v470
          %v1061 = vpop.f32.mrb[0].mxu0
          %v1062 = vadd.f32 %v901, %v1061
          %v1063 = vpop.f32.mrb[0].mxu0
          %v1064 = vadd.f32 %v903, %v1063
          %1065 = vmatprep.mubr.f32.mxu0 %v478
          %1066 = vmatmul.mubr.f32.gmra.mrb[0].mxu0 %v477
          %v1067 = vpop.f32.mrb[0].mxu0
          %v1068 = vadd.f32 %v907, %v1067
          %v1069 = vpop.f32.mrb[0].mxu0
          %v1070 = vadd.f32 %v909, %v1069
          %1071 = vmatprep.mubr.f32.mxu0 %v485
          %1072 = vmatmul.mubr.f32.gmra.mrb[0].mxu0 %v484
          %v1073 = vpop.f32.mrb[0].mxu0
          %v1074 = vadd.f32 %v913, %v1073
          %v1075 = vpop.f32.mrb[0].mxu0
          %v1076 = vadd.f32 %v915, %v1075
          %1077 = vmatprep.mubr.f32.mxu0 %v492
          %1078 = vmatmul.mubr.f32.gmra.mrb[0].mxu0 %v491
          %v1079 = vpop.f32.mrb[0].mxu0
          %v1080 = vadd.f32 %v919, %v1079
          %v1081 = vpop.f32.mrb[0].mxu0
          %v1082 = vadd.f32 %v921, %v1081
          %1083 = vmatprep.mubr.f32.mxu0 %v499
          %1084 = vmatmul.mubr.f32.gmra.mrb[0].mxu0 %v498
          %v1085 = vpop.f32.mrb[0].mxu0
          %v1086 = vadd.f32 %v925, %v1085
          %v1087 = vpop.f32.mrb[0].mxu0
          %v1088 = vadd.f32 %v927, %v1087
          %1089 = vmatprep.mubr.f32.mxu0 %v506
          %1090 = vmatmul.mubr.f32.gmra.mrb[0].mxu0 %v505
          %v1091 = vpop.f32.mrb[0].mxu0
          %v1092 = vadd.f32 %v931, %v1091
          %v1093 = vpop.f32.mrb[0].mxu0
          %v1094 = vadd.f32 %v933, %v1093
          %1095 = vmatprep.mubr.f32.mxu0 %v513
          %1096 = vmatmul.mubr.f32.gmra.mrb[0].mxu0 %v512
          %v1097 = vpop.f32.mrb[0].mxu0
          %v1098 = vadd.f32 %v937, %v1097
          %v1099 = vpop.f32.mrb[0].mxu0
          %v1100 = vadd.f32 %v939, %v1099
          %1101 = vmatprep.mubr.f32.mxu0 %v520
          %1102 = vmatmul.mubr.f32.gmra.mrb[0].mxu0 %v519
          %v1103 = vpop.f32.mrb[0].mxu0
          %v1104 = vadd.f32 %v943, %v1103
          %v1105 = vpop.f32.mrb[0].mxu0
          %v1106 = vadd.f32 %v945, %v1105
          %1107 = vmatprep.mubr.f32.mxu0 %v527
          %1108 = vmatmul.mubr.f32.gmra.mrb[0].mxu0 %v526
          %v1109 = vpop.f32.mrb[0].mxu0
          %v1110 = vadd.f32 %v949, %v1109
          %v1111 = vpop.f32.mrb[0].mxu0
          %v1112 = vadd.f32 %v951, %v1111
          %1113 = vmatprep.mubr.f32.mxu0 %v534
          %1114 = vmatmul.mubr.f32.gmra.mrb[0].mxu0 %v533
          %v1115 = vpop.f32.mrb[0].mxu0
          %v1116 = vadd.f32 %v955, %v1115
          %v1117 = vpop.f32.mrb[0].mxu0
          %v1118 = vadd.f32 %v957, %v1117
          %1119 = vmatprep.mubr.f32.mxu0 %v541
          %1120 = vmatmul.mubr.f32.gmra.mrb[0].mxu0 %v540
          %v1121 = vpop.f32.mrb[0].mxu0
          %v1122 = vadd.f32 %v961, %v1121
          %v1123 = vpop.f32.mrb[0].mxu0
          %v1124 = vadd.f32 %v963, %v1123
          %1125 = vmatprep.mubr.f32.mxu0 %v548
          %1126 = vmatmul.mubr.f32.gmra.mrb[0].mxu0 %v547
          %v1127 = vpop.f32.mrb[0].mxu0
          %v1128 = vadd.f32 %v967, %v1127
          %v1129 = vpop.f32.mrb[0].mxu0
          %v1130 = vadd.f32 %v969, %v1129
          %1131 = vmatprep.mubr.f32.mxu0 %v555
          %1132 = vmatmul.mubr.f32.gmra.mrb[0].mxu0 %v554
          %v1133 = vpop.f32.mrb[0].mxu0
          %v1134 = vadd.f32 %v973, %v1133
          %v1135 = vpop.f32.mrb[0].mxu0
          %v1136 = vadd.f32 %v975, %v1135
          %1137 = vdwg.mxu0
          %1138 = vmatprep.subr.mxu0 %v688
          %1139 = vmatpush1.msra.mxu0 %v687
          %1140 = vmatprep.subr.mxu0 %v690
          %1141 = vmatpush1.msra.mxu0 %v689
          %1142 = vmatprep.subr.mxu0 %v692
          %1143 = vmatpush1.msra.mxu0 %v691
          %1144 = vmatprep.subr.mxu0 %v694
          %1145 = vmatpush1.msra.mxu0 %v693
          %1146 = vmatprep.subr.mxu0 %v696
          %1147 = vmatpush1.msra.mxu0 %v695
          %1148 = vmatprep.subr.mxu0 %v698
          %1149 = vmatpush1.msra.mxu0 %v697
          %1150 = vmatprep.subr.mxu0 %v700
          %1151 = vmatpush1.msra.mxu0 %v699
          %1152 = vmatprep.subr.mxu0 %v702
          %1153 = vmatpush1.msra.mxu0 %v701
          %1154 = vmatprep.subr.mxu0 %v704
          %1155 = vmatpush1.msra.mxu0 %v703
          %1156 = vmatprep.subr.mxu0 %v706
          %1157 = vmatpush1.msra.mxu0 %v705
          %1158 = vmatprep.subr.mxu0 %v708
          %1159 = vmatpush1.msra.mxu0 %v707
          %1160 = vmatprep.subr.mxu0 %v710
          %1161 = vmatpush1.msra.mxu0 %v709
          %1162 = vmatprep.subr.mxu0 %v712
          %1163 = vmatpush1.msra.mxu0 %v711
          %1164 = vmatprep.subr.mxu0 %v714
          %1165 = vmatpush1.msra.mxu0 %v713
          %1166 = vmatprep.subr.mxu0 %v716
          %1167 = vmatpush1.msra.mxu0 %v715
          %1168 = vmatprep.subr.mxu0 %v718
          %1169 = vmatpush1.msra.mxu0 %v717
          %1170 = vmatprep.subr.mxu0 %v720
          %1171 = vmatpush1.msra.mxu0 %v719
          %1172 = vmatprep.subr.mxu0 %v722
          %1173 = vmatpush1.msra.mxu0 %v721
          %1174 = vmatprep.subr.mxu0 %v724
          %1175 = vmatpush1.msra.mxu0 %v723
          %1176 = vmatprep.subr.mxu0 %v726
          %1177 = vmatpush1.msra.mxu0 %v725
          %1178 = vmatprep.subr.mxu0 %v728
          %1179 = vmatpush1.msra.mxu0 %v727
          %1180 = vmatprep.subr.mxu0 %v730
          %1181 = vmatpush1.msra.mxu0 %v729
          %1182 = vmatprep.subr.mxu0 %v732
          %1183 = vmatpush1.msra.mxu0 %v731
          %1184 = vmatprep.subr.mxu0 %v734
          %1185 = vmatpush1.msra.mxu0 %v733
          %1186 = vmatprep.subr.mxu0 %v736
          %1187 = vmatpush1.msra.mxu0 %v735
          %1188 = vmatprep.subr.mxu0 %v738
          %1189 = vmatpush1.msra.mxu0 %v737
          %1190 = vmatprep.subr.mxu0 %v740
          %1191 = vmatpush1.msra.mxu0 %v739
          %1192 = vmatprep.subr.mxu0 %v742
          %1193 = vmatpush1.msra.mxu0 %v741
          %1194 = vmatprep.subr.mxu0 %v744
          %1195 = vmatpush1.msra.mxu0 %v743
          %1196 = vmatprep.subr.mxu0 %v746
          %1197 = vmatpush1.msra.mxu0 %v745
          %1198 = vmatprep.subr.mxu0 %v748
          %1199 = vmatpush1.msra.mxu0 %v747
          %1200 = vmatprep.subr.mxu0 %v750
          %1201 = vmatpush1.msra.mxu0 %v749
          %1202 = vmatprep.mubr.f32.mxu0 %v452
          %1203 = vmatmul.mubr.f32.gmra.mrb[0].mxu0 %v451
          %v1204 = vpop.f32.mrb[0].mxu0
          %v1205 = vadd.f32 %v1044, %v1204
          %v1206 = vpop.f32.mrb[0].mxu0
          %v1207 = vadd.f32 %v1046, %v1206
          %1208 = vmatprep.mubr.f32.mxu0 %v459
          %1209 = vmatmul.mubr.f32.gmra.mrb[0].mxu0 %v458
          %v1210 = vpop.f32.mrb[0].mxu0
          %v1211 = vadd.f32 %v1050, %v1210
          %v1212 = vpop.f32.mrb[0].mxu0
          %v1213 = vadd.f32 %v1052, %v1212
          %1214 = vmatprep.mubr.f32.mxu0 %v466
          %1215 = vmatmul.mubr.f32.gmra.mrb[0].mxu0 %v465
          %v1216 = vpop.f32.mrb[0].mxu0
          %v1217 = vadd.f32 %v1056, %v1216
          %v1218 = vpop.f32.mrb[0].mxu0
          %v1219 = vadd.f32 %v1058, %v1218
          %1220 = vmatprep.mubr.f32.mxu0 %v473
          %1221 = vmatmul.mubr.f32.gmra.mrb[0].mxu0 %v472
          %v1222 = vpop.f32.mrb[0].mxu0
          %v1223 = vadd.f32 %v1062, %v1222
          %v1224 = vpop.f32.mrb[0].mxu0
          %v1225 = vadd.f32 %v1064, %v1224
          %1226 = vmatprep.mubr.f32.mxu0 %v480
          %1227 = vmatmul.mubr.f32.gmra.mrb[0].mxu0 %v479
          %v1228 = vpop.f32.mrb[0].mxu0
          %v1229 = vadd.f32 %v1068, %v1228
          %v1230 = vpop.f32.mrb[0].mxu0
          %v1231 = vadd.f32 %v1070, %v1230
          %1232 = vmatprep.mubr.f32.mxu0 %v487
          %1233 = vmatmul.mubr.f32.gmra.mrb[0].mxu0 %v486
          %v1234 = vpop.f32.mrb[0].mxu0
          %v1235 = vadd.f32 %v1074, %v1234
          %v1236 = vpop.f32.mrb[0].mxu0
          %v1237 = vadd.f32 %v1076, %v1236
          %1238 = vmatprep.mubr.f32.mxu0 %v494
          %1239 = vmatmul.mubr.f32.gmra.mrb[0].mxu0 %v493
          %v1240 = vpop.f32.mrb[0].mxu0
          %v1241 = vadd.f32 %v1080, %v1240
          %v1242 = vpop.f32.mrb[0].mxu0
          %v1243 = vadd.f32 %v1082, %v1242
          %1244 = vmatprep.mubr.f32.mxu0 %v501
          %1245 = vmatmul.mubr.f32.gmra.mrb[0].mxu0 %v500
          %v1246 = vpop.f32.mrb[0].mxu0
          %v1247 = vadd.f32 %v1086, %v1246
          %v1248 = vpop.f32.mrb[0].mxu0
          %v1249 = vadd.f32 %v1088, %v1248
          %1250 = vmatprep.mubr.f32.mxu0 %v508
          %1251 = vmatmul.mubr.f32.gmra.mrb[0].mxu0 %v507
          %v1252 = vpop.f32.mrb[0].mxu0
          %v1253 = vadd.f32 %v1092, %v1252
          %v1254 = vpop.f32.mrb[0].mxu0
          %v1255 = vadd.f32 %v1094, %v1254
          %1256 = vmatprep.mubr.f32.mxu0 %v515
          %1257 = vmatmul.mubr.f32.gmra.mrb[0].mxu0 %v514
          %v1258 = vpop.f32.mrb[0].mxu0
          %v1259 = vadd.f32 %v1098, %v1258
          %v1260 = vpop.f32.mrb[0].mxu0
          %v1261 = vadd.f32 %v1100, %v1260
          %1262 = vmatprep.mubr.f32.mxu0 %v522
          %1263 = vmatmul.mubr.f32.gmra.mrb[0].mxu0 %v521
          %v1264 = vpop.f32.mrb[0].mxu0
          %v1265 = vadd.f32 %v1104, %v1264
          %v1266 = vpop.f32.mrb[0].mxu0
          %v1267 = vadd.f32 %v1106, %v1266
          %1268 = vmatprep.mubr.f32.mxu0 %v529
          %1269 = vmatmul.mubr.f32.gmra.mrb[0].mxu0 %v528
          %v1270 = vpop.f32.mrb[0].mxu0
          %v1271 = vadd.f32 %v1110, %v1270
          %v1272 = vpop.f32.mrb[0].mxu0
          %v1273 = vadd.f32 %v1112, %v1272
          %1274 = vmatprep.mubr.f32.mxu0 %v536
          %1275 = vmatmul.mubr.f32.gmra.mrb[0].mxu0 %v535
          %v1276 = vpop.f32.mrb[0].mxu0
          %v1277 = vadd.f32 %v1116, %v1276
          %v1278 = vpop.f32.mrb[0].mxu0
          %v1279 = vadd.f32 %v1118, %v1278
          %1280 = vmatprep.mubr.f32.mxu0 %v543
          %1281 = vmatmul.mubr.f32.gmra.mrb[0].mxu0 %v542
          %v1282 = vpop.f32.mrb[0].mxu0
          %v1283 = vadd.f32 %v1122, %v1282
          %v1284 = vpop.f32.mrb[0].mxu0
          %v1285 = vadd.f32 %v1124, %v1284
          %1286 = vmatprep.mubr.f32.mxu0 %v550
          %1287 = vmatmul.mubr.f32.gmra.mrb[0].mxu0 %v549
          %v1288 = vpop.f32.mrb[0].mxu0
          %v1289 = vadd.f32 %v1128, %v1288
          %v1290 = vpop.f32.mrb[0].mxu0
          %v1291 = vadd.f32 %v1130, %v1290
          %1292 = vmatprep.mubr.f32.mxu0 %v557
          %1293 = vmatmul.mubr.f32.gmra.mrb[0].mxu0 %v556
          %v1294 = vpop.f32.mrb[0].mxu0
          %v1295 = vadd.f32 %v1134, %v1294
          %v1296 = vpop.f32.mrb[0].mxu0
          %v1297 = vadd.f32 %v1136, %v1296
          %1298 = vdwg.mxu0
          %1299 = vmatprep.subr.mxu0 %v752
          %1300 = vmatpush1.msra.mxu0 %v751
          %1301 = vmatprep.subr.mxu0 %v754
          %1302 = vmatpush1.msra.mxu0 %v753
          %1303 = vmatprep.subr.mxu0 0.0
          %1304 = vmatpush1.msra.mxu0 0.0
          %1305 = vmatprep.subr.mxu0 0.0
          %1306 = vmatpush1.msra.mxu0 0.0
          %1307 = vmatprep.subr.mxu0 0.0
          %1308 = vmatpush1.msra.mxu0 0.0
          %1309 = vmatprep.subr.mxu0 0.0
          %1310 = vmatpush1.msra.mxu0 0.0
          %1311 = vmatprep.subr.mxu0 0.0
          %1312 = vmatpush1.msra.mxu0 0.0
          %1313 = vmatprep.subr.mxu0 0.0
          %1314 = vmatpush1.msra.mxu0 0.0
          %1315 = vmatprep.subr.mxu0 0.0
          %1316 = vmatpush1.msra.mxu0 0.0
          %1317 = vmatprep.subr.mxu0 0.0
          %1318 = vmatpush1.msra.mxu0 0.0
          %1319 = vmatprep.subr.mxu0 0.0
          %1320 = vmatpush1.msra.mxu0 0.0
          %1321 = vmatprep.subr.mxu0 0.0
          %1322 = vmatpush1.msra.mxu0 0.0
          %1323 = vmatprep.subr.mxu0 0.0
          %1324 = vmatpush1.msra.mxu0 0.0
          %1325 = vmatprep.subr.mxu0 0.0
          %1326 = vmatpush1.msra.mxu0 0.0
          %1327 = vmatprep.subr.mxu0 0.0
          %1328 = vmatpush1.msra.mxu0 0.0
          %1329 = vmatprep.subr.mxu0 0.0
          %1330 = vmatpush1.msra.mxu0 0.0
          %1331 = vmatprep.subr.mxu0 0.0
          %1332 = vmatpush1.msra.mxu0 0.0
          %1333 = vmatprep.subr.mxu0 0.0
          %1334 = vmatpush1.msra.mxu0 0.0
          %1335 = vmatprep.subr.mxu0 0.0
          %1336 = vmatpush1.msra.mxu0 0.0
          %1337 = vmatprep.subr.mxu0 0.0
          %1338 = vmatpush1.msra.mxu0 0.0
          %1339 = vmatprep.subr.mxu0 0.0
          %1340 = vmatpush1.msra.mxu0 0.0
          %1341 = vmatprep.subr.mxu0 0.0
          %1342 = vmatpush1.msra.mxu0 0.0
          %1343 = vmatprep.subr.mxu0 0.0
          %1344 = vmatpush1.msra.mxu0 0.0
          %1345 = vmatprep.subr.mxu0 0.0
          %1346 = vmatpush1.msra.mxu0 0.0
          %1347 = vmatprep.subr.mxu0 0.0
          %1348 = vmatpush1.msra.mxu0 0.0
          %1349 = vmatprep.subr.mxu0 0.0
          %1350 = vmatpush1.msra.mxu0 0.0
          %1351 = vmatprep.subr.mxu0 0.0
          %1352 = vmatpush1.msra.mxu0 0.0
          %1353 = vmatprep.subr.mxu0 0.0
          %1354 = vmatpush1.msra.mxu0 0.0
          %1355 = vmatprep.subr.mxu0 0.0
          %1356 = vmatpush1.msra.mxu0 0.0
          %1357 = vmatprep.subr.mxu0 0.0
          %1358 = vmatpush1.msra.mxu0 0.0
          %1359 = vmatprep.subr.mxu0 0.0
          %1360 = vmatpush1.msra.mxu0 0.0
          %1361 = vmatprep.subr.mxu0 0.0
          %1362 = vmatpush1.msra.mxu0 0.0
          %1363 = vmatprep.mubr.f32.mxu0 0.0
          %1364 = vmatmul.mubr.f32.gmra.mrb[0].mxu0 %v769
          %v1365 = vpop.f32.mrb[0].mxu0
          %v1366 = vadd.f32 %v1205, %v1365
          %v1367 = vpop.f32.mrb[0].mxu0
          %v1368 = vadd.f32 %v1207, %v1367
          %1369 = vmatprep.mubr.f32.mxu0 0.0
          %1370 = vmatmul.mubr.f32.gmra.mrb[0].mxu0 %v772
          %v1371 = vpop.f32.mrb[0].mxu0
          %v1372 = vadd.f32 %v1211, %v1371
          %v1373 = vpop.f32.mrb[0].mxu0
          %v1374 = vadd.f32 %v1213, %v1373
          %1375 = vmatprep.mubr.f32.mxu0 0.0
          %1376 = vmatmul.mubr.f32.gmra.mrb[0].mxu0 %v775
          %v1377 = vpop.f32.mrb[0].mxu0
          %v1378 = vadd.f32 %v1217, %v1377
          %v1379 = vpop.f32.mrb[0].mxu0
          %v1380 = vadd.f32 %v1219, %v1379
          %1381 = vmatprep.mubr.f32.mxu0 0.0
          %1382 = vmatmul.mubr.f32.gmra.mrb[0].mxu0 %v778
          %v1383 = vpop.f32.mrb[0].mxu0
          %v1384 = vadd.f32 %v1223, %v1383
          %v1385 = vpop.f32.mrb[0].mxu0
          %v1386 = vadd.f32 %v1225, %v1385
          %1387 = vmatprep.mubr.f32.mxu0 0.0
          %1388 = vmatmul.mubr.f32.gmra.mrb[0].mxu0 %v781
          %v1389 = vpop.f32.mrb[0].mxu0
          %v1390 = vadd.f32 %v1229, %v1389
          %v1391 = vpop.f32.mrb[0].mxu0
          %v1392 = vadd.f32 %v1231, %v1391
          %1393 = vmatprep.mubr.f32.mxu0 0.0
          %1394 = vmatmul.mubr.f32.gmra.mrb[0].mxu0 %v784
          %v1395 = vpop.f32.mrb[0].mxu0
          %v1396 = vadd.f32 %v1235, %v1395
          %v1397 = vpop.f32.mrb[0].mxu0
          %v1398 = vadd.f32 %v1237, %v1397
          %1399 = vmatprep.mubr.f32.mxu0 0.0
          %1400 = vmatmul.mubr.f32.gmra.mrb[0].mxu0 %v787
          %v1401 = vpop.f32.mrb[0].mxu0
          %v1402 = vadd.f32 %v1241, %v1401
          %v1403 = vpop.f32.mrb[0].mxu0
          %v1404 = vadd.f32 %v1243, %v1403
          %1405 = vmatprep.mubr.f32.mxu0 0.0
          %1406 = vmatmul.mubr.f32.gmra.mrb[0].mxu0 %v790
          %v1407 = vpop.f32.mrb[0].mxu0
          %v1408 = vadd.f32 %v1247, %v1407
          %v1409 = vpop.f32.mrb[0].mxu0
          %v1410 = vadd.f32 %v1249, %v1409
          %1411 = vmatprep.mubr.f32.mxu0 0.0
          %1412 = vmatmul.mubr.f32.gmra.mrb[0].mxu0 %v793
          %v1413 = vpop.f32.mrb[0].mxu0
          %v1414 = vadd.f32 %v1253, %v1413
          %v1415 = vpop.f32.mrb[0].mxu0
          %v1416 = vadd.f32 %v1255, %v1415
          %1417 = vmatprep.mubr.f32.mxu0 0.0
          %1418 = vmatmul.mubr.f32.gmra.mrb[0].mxu0 %v796
          %v1419 = vpop.f32.mrb[0].mxu0
          %v1420 = vadd.f32 %v1259, %v1419
          %v1421 = vpop.f32.mrb[0].mxu0
          %v1422 = vadd.f32 %v1261, %v1421
          %1423 = vmatprep.mubr.f32.mxu0 0.0
          %1424 = vmatmul.mubr.f32.gmra.mrb[0].mxu0 %v799
          %v1425 = vpop.f32.mrb[0].mxu0
          %v1426 = vadd.f32 %v1265, %v1425
          %v1427 = vpop.f32.mrb[0].mxu0
          %v1428 = vadd.f32 %v1267, %v1427
          %1429 = vmatprep.mubr.f32.mxu0 0.0
          %1430 = vmatmul.mubr.f32.gmra.mrb[0].mxu0 %v802
          %v1431 = vpop.f32.mrb[0].mxu0
          %v1432 = vadd.f32 %v1271, %v1431
          %v1433 = vpop.f32.mrb[0].mxu0
          %v1434 = vadd.f32 %v1273, %v1433
          %1435 = vmatprep.mubr.f32.mxu0 0.0
          %1436 = vmatmul.mubr.f32.gmra.mrb[0].mxu0 %v805
          %v1437 = vpop.f32.mrb[0].mxu0
          %v1438 = vadd.f32 %v1277, %v1437
          %v1439 = vpop.f32.mrb[0].mxu0
          %v1440 = vadd.f32 %v1279, %v1439
          %1441 = vmatprep.mubr.f32.mxu0 0.0
          %1442 = vmatmul.mubr.f32.gmra.mrb[0].mxu0 %v808
          %v1443 = vpop.f32.mrb[0].mxu0
          %v1444 = vadd.f32 %v1283, %v1443
          %v1445 = vpop.f32.mrb[0].mxu0
          %v1446 = vadd.f32 %v1285, %v1445
          %1447 = vmatprep.mubr.f32.mxu0 0.0
          %1448 = vmatmul.mubr.f32.gmra.mrb[0].mxu0 %v811
          %v1449 = vpop.f32.mrb[0].mxu0
          %v1450 = vadd.f32 %v1289, %v1449
          %v1451 = vpop.f32.mrb[0].mxu0
          %v1452 = vadd.f32 %v1291, %v1451
          %1453 = vmatprep.mubr.f32.mxu0 0.0
          %1454 = vmatmul.mubr.f32.gmra.mrb[0].mxu0 %v814
          %v1455 = vpop.f32.mrb[0].mxu0
          %v1456 = vadd.f32 %v1295, %v1455
          %v1457 = vpop.f32.mrb[0].mxu0
          %v1458 = vadd.f32 %v1297, %v1457
          %1459 = vdwg.mxu0
          %s1460 = sshra.s32 %s432, 3
          %s1461 = sand.u32 %s432, 7
          %s1462 = smul.u32 %s1460, 2
          %s1463 = smul.addr %s1462, 8
          %s1464 = scalar_lea.vmem [#allocation2], %s1463
          %1465 = vst [vmem:[%s1464] sm:$0xff] %v1366
          %1466 = vst [vmem:[%s1464 + $0x8] sm:$0xff] %v1368
          %1467 = vst [vmem:[%s1464 + $0x10] sm:$0xff] %v1372
          %1468 = vst [vmem:[%s1464 + $0x18] sm:$0xff] %v1374
          %1469 = vst [vmem:[%s1464 + $0x20] sm:$0xff] %v1378
          %1470 = vst [vmem:[%s1464 + $0x28] sm:$0xff] %v1380
          %1471 = vst [vmem:[%s1464 + $0x30] sm:$0xff] %v1384
          %1472 = vst [vmem:[%s1464 + $0x38] sm:$0xff] %v1386
          %1473 = vst [vmem:[%s1464 + $0x40] sm:$0xff] %v1390
          %1474 = vst [vmem:[%s1464 + $0x48] sm:$0xff] %v1392
          %1475 = vst [vmem:[%s1464 + $0x50] sm:$0xff] %v1396
          %1476 = vst [vmem:[%s1464 + $0x58] sm:$0xff] %v1398
          %1477 = vst [vmem:[%s1464 + $0x60] sm:$0xff] %v1402
          %1478 = vst [vmem:[%s1464 + $0x68] sm:$0xff] %v1404
          %1479 = vst [vmem:[%s1464 + $0x70] sm:$0xff] %v1408
          %1480 = vst [vmem:[%s1464 + $0x78] sm:$0xff] %v1410
          %1481 = vst [vmem:[%s1464 + $0x80] sm:$0xff] %v1414
          %1482 = vst [vmem:[%s1464 + $0x88] sm:$0xff] %v1416
          %1483 = vst [vmem:[%s1464 + $0x90] sm:$0xff] %v1420
          %1484 = vst [vmem:[%s1464 + $0x98] sm:$0xff] %v1422
          %1485 = vst [vmem:[%s1464 + $0xa0] sm:$0xff] %v1426
          %1486 = vst [vmem:[%s1464 + $0xa8] sm:$0xff] %v1428
          %1487 = vst [vmem:[%s1464 + $0xb0] sm:$0xff] %v1432
          %1488 = vst [vmem:[%s1464 + $0xb8] sm:$0xff] %v1434
          %1489 = vst [vmem:[%s1464 + $0xc0] sm:$0xff] %v1438
          %1490 = vst [vmem:[%s1464 + $0xc8] sm:$0xff] %v1440
          %1491 = vst [vmem:[%s1464 + $0xd0] sm:$0xff] %v1444
          %1492 = vst [vmem:[%s1464 + $0xd8] sm:$0xff] %v1446
          %1493 = vst [vmem:[%s1464 + $0xe0] sm:$0xff] %v1450
          %1494 = vst [vmem:[%s1464 + $0xe8] sm:$0xff] %v1452
          %1495 = vst [vmem:[%s1464 + $0xf0] sm:$0xff] %v1456
          %1496 = vst [vmem:[%s1464 + $0xf8] sm:$0xff] %v1458
          %v1497 = vlaneseq
          %v1498 = vshrl.u32 %v1497, 7
          %v1499 = vadd.s32 %v1498, 8
          %v1500 = vadd.s32 %v1498, 16
          %v1501 = vadd.s32 %v1498, 24
          %v1502 = vadd.s32 %v1498, 32
          %v1503 = vadd.s32 %v1498, 40
          %v1504 = vadd.s32 %v1498, 48
          %v1505 = vadd.s32 %v1498, 56
          %v1506 = vadd.s32 %v1498, 64
          %v1507 = vadd.s32 %v1498, 72
          %v1508 = vadd.s32 %v1498, 80
          %v1509 = vadd.s32 %v1498, 88
          %v1510 = vadd.s32 %v1498, 96
          %v1511 = vadd.s32 %v1498, 104
          %v1512 = vadd.s32 %v1498, 112
          %v1513 = vadd.s32 %v1498, 120
          %v1514 = vstv %s432
          %v1515 = vadd.s32 %v1514, %v1498
          %v1516 = vadd.s32 %v1514, %v1499
          %v1517 = vadd.s32 %v1514, %v1500
          %v1518 = vadd.s32 %v1514, %v1501
          %v1519 = vadd.s32 %v1514, %v1502
          %v1520 = vadd.s32 %v1514, %v1503
          %v1521 = vadd.s32 %v1514, %v1504
          %v1522 = vadd.s32 %v1514, %v1505
          %v1523 = vadd.s32 %v1514, %v1506
          %v1524 = vadd.s32 %v1514, %v1507
          %v1525 = vadd.s32 %v1514, %v1508
          %v1526 = vadd.s32 %v1514, %v1509
          %v1527 = vadd.s32 %v1514, %v1510
          %v1528 = vadd.s32 %v1514, %v1511
          %v1529 = vadd.s32 %v1514, %v1512
          %v1530 = vadd.s32 %v1514, %v1513
          %vm1531 = vcmp.lt.s32.totalorder %v1515, 200
          %vm1532 = vcmp.lt.s32.totalorder %v1516, 200
          %vm1533 = vcmp.lt.s32.totalorder %v1517, 200
          %vm1534 = vcmp.lt.s32.totalorder %v1518, 200
          %vm1535 = vcmp.lt.s32.totalorder %v1519, 200
          %vm1536 = vcmp.lt.s32.totalorder %v1520, 200
          %vm1537 = vcmp.lt.s32.totalorder %v1521, 200
          %vm1538 = vcmp.lt.s32.totalorder %v1522, 200
          %vm1539 = vcmp.lt.s32.totalorder %v1523, 200
          %vm1540 = vcmp.lt.s32.totalorder %v1524, 200
          %vm1541 = vcmp.lt.s32.totalorder %v1525, 200
          %vm1542 = vcmp.lt.s32.totalorder %v1526, 200
          %vm1543 = vcmp.lt.s32.totalorder %v1527, 200
          %vm1544 = vcmp.lt.s32.totalorder %v1528, 200
          %vm1545 = vcmp.lt.s32.totalorder %v1529, 200
          %vm1546 = vcmp.lt.s32.totalorder %v1530, 200
          %v1547 = vsel %vm1531, 1, 0
          %v1548 = vsel %vm1532, 1, 0
          %v1549 = vsel %vm1533, 1, 0
          %v1550 = vsel %vm1534, 1, 0
          %v1551 = vsel %vm1535, 1, 0
          %v1552 = vsel %vm1536, 1, 0
          %v1553 = vsel %vm1537, 1, 0
          %v1554 = vsel %vm1538, 1, 0
          %v1555 = vsel %vm1539, 1, 0
          %v1556 = vsel %vm1540, 1, 0
          %v1557 = vsel %vm1541, 1, 0
          %v1558 = vsel %vm1542, 1, 0
          %v1559 = vsel %vm1543, 1, 0
          %v1560 = vsel %vm1544, 1, 0
          %v1561 = vsel %vm1545, 1, 0
          %v1562 = vsel %vm1546, 1, 0
          %vm1563 = vcmp.eq.s32.totalorder %v1547, 1
          %vm1564 = vcmp.eq.s32.totalorder %v1548, 1
          %vm1565 = vcmp.eq.s32.totalorder %v1549, 1
          %vm1566 = vcmp.eq.s32.totalorder %v1550, 1
          %vm1567 = vcmp.eq.s32.totalorder %v1551, 1
          %vm1568 = vcmp.eq.s32.totalorder %v1552, 1
          %vm1569 = vcmp.eq.s32.totalorder %v1553, 1
          %vm1570 = vcmp.eq.s32.totalorder %v1554, 1
          %vm1571 = vcmp.eq.s32.totalorder %v1555, 1
          %vm1572 = vcmp.eq.s32.totalorder %v1556, 1
          %vm1573 = vcmp.eq.s32.totalorder %v1557, 1
          %vm1574 = vcmp.eq.s32.totalorder %v1558, 1
          %vm1575 = vcmp.eq.s32.totalorder %v1559, 1
          %vm1576 = vcmp.eq.s32.totalorder %v1560, 1
          %vm1577 = vcmp.eq.s32.totalorder %v1561, 1
          %vm1578 = vcmp.eq.s32.totalorder %v1562, 1
          %v1579 = vsel %vm1563, %v1366, 0.0
          %v1580 = vsel %vm1563, %v1368, 0.0
          %v1581 = vsel %vm1564, %v1372, 0.0
          %v1582 = vsel %vm1564, %v1374, 0.0
          %v1583 = vsel %vm1565, %v1378, 0.0
          %v1584 = vsel %vm1565, %v1380, 0.0
          %v1585 = vsel %vm1566, %v1384, 0.0
          %v1586 = vsel %vm1566, %v1386, 0.0
          %v1587 = vsel %vm1567, %v1390, 0.0
          %v1588 = vsel %vm1567, %v1392, 0.0
          %v1589 = vsel %vm1568, %v1396, 0.0
          %v1590 = vsel %vm1568, %v1398, 0.0
          %v1591 = vsel %vm1569, %v1402, 0.0
          %v1592 = vsel %vm1569, %v1404, 0.0
          %v1593 = vsel %vm1570, %v1408, 0.0
          %v1594 = vsel %vm1570, %v1410, 0.0
          %v1595 = vsel %vm1571, %v1414, 0.0
          %v1596 = vsel %vm1571, %v1416, 0.0
          %v1597 = vsel %vm1572, %v1420, 0.0
          %v1598 = vsel %vm1572, %v1422, 0.0
          %v1599 = vsel %vm1573, %v1426, 0.0
          %v1600 = vsel %vm1573, %v1428, 0.0
          %v1601 = vsel %vm1574, %v1432, 0.0
          %v1602 = vsel %vm1574, %v1434, 0.0
          %v1603 = vsel %vm1575, %v1438, 0.0
          %v1604 = vsel %vm1575, %v1440, 0.0
          %v1605 = vsel %vm1576, %v1444, 0.0
          %v1606 = vsel %vm1576, %v1446, 0.0
          %v1607 = vsel %vm1577, %v1450, 0.0
          %v1608 = vsel %vm1577, %v1452, 0.0
          %v1609 = vsel %vm1578, %v1456, 0.0
          %v1610 = vsel %vm1578, %v1458, 0.0
          %v1611 = vld [vmem:[#allocation3] sm:$0x3]
          %v1612 = vadd.f32 %v1579, %v1581
          %v1613 = vadd.f32 %v1612, %v1583
          %v1614 = vadd.f32 %v1613, %v1585
          %v1615 = vadd.f32 %v1614, %v1587
          %v1616 = vadd.f32 %v1615, %v1589
          %v1617 = vadd.f32 %v1616, %v1591
          %v1618 = vadd.f32 %v1617, %v1593
          %v1619 = vadd.f32 %v1618, %v1595
          %v1620 = vadd.f32 %v1619, %v1597
          %v1621 = vadd.f32 %v1620, %v1599
          %v1622 = vadd.f32 %v1621, %v1601
          %v1623 = vadd.f32 %v1622, %v1603
          %v1624 = vadd.f32 %v1623, %v1605
          %v1625 = vadd.f32 %v1624, %v1607
          %v1626 = vadd.f32 %v1625, %v1609
          %v1627 = vrot.slane %v1626, 4
          %v1628 = vadd.f32 %v1626, %v1627
          %v1629 = vrot.slane %v1628, 2
          %v1630 = vadd.f32 %v1628, %v1629
          %v1631 = vrot.slane %v1630, 1
          %v1632 = vadd.f32 %v1630, %v1631
          %v1633 = vadd.f32 %v1580, %v1582
          %v1634 = vadd.f32 %v1633, %v1584
          %v1635 = vadd.f32 %v1634, %v1586
          %v1636 = vadd.f32 %v1635, %v1588
          %v1637 = vadd.f32 %v1636, %v1590
          %v1638 = vadd.f32 %v1637, %v1592
          %v1639 = vadd.f32 %v1638, %v1594
          %v1640 = vadd.f32 %v1639, %v1596
          %v1641 = vadd.f32 %v1640, %v1598
          %v1642 = vadd.f32 %v1641, %v1600
          %v1643 = vadd.f32 %v1642, %v1602
          %v1644 = vadd.f32 %v1643, %v1604
          %v1645 = vadd.f32 %v1644, %v1606
          %v1646 = vadd.f32 %v1645, %v1608
          %v1647 = vadd.f32 %v1646, %v1610
          %v1648 = vrot.slane %v1647, 4
          %v1649 = vadd.f32 %v1647, %v1648
          %v1650 = vrot.slane %v1649, 2
          %v1651 = vadd.f32 %v1649, %v1650
          %v1652 = vrot.slane %v1651, 1
          %v1653 = vadd.f32 %v1651, %v1652
          %v1656 = vcombine.low %v1632, %v1653
          %v1658 = vunpack.c.l.s4 1966171168
          %v1659 = vunpack.c.0.s8 %v1658
          %v1660 = vlaneseq
          %v1661 = vshrl.u32 %v1660, 7
          %v1662 = vsub.s32 %v1659, %v1661
          %v1663 = vrot.slane %v1656, %v1662
          %v1665 = vunpack.c.l.s4 1966171168
          %v1666 = vunpack.c.0.s8 %v1665
          %v1667 = vlaneseq
          %v1668 = vshrl.u32 %v1667, 7
          %v1669 = vsub.s32 %v1666, %v1668
          %v1670 = vrot.slane %v1663, %v1669
          %v1672 = vadd.f32 %v1611, %v1670
          %v1673 = vlaneseq
          %vm1674 = vcmp.ge.s32.totalorder %v1673, 0
          %vm1675 = vcmp.lt.s32.totalorder %v1673, 256
          %vm1676 = vmand %vm1674, %vm1675
          %1677 = vst.msk [vmem:[#allocation3] sm:$0x3] %vm1676, %v1672
          %v1678 = vld [vmem:[#allocation4] sm:$0x3]
          %v1679 = vmul.f32 %v1579, %v1579
          %v1680 = vmul.f32 %v1580, %v1580
          %v1681 = vmul.f32 %v1581, %v1581
          %v1682 = vmul.f32 %v1582, %v1582
          %v1683 = vmul.f32 %v1583, %v1583
          %v1684 = vmul.f32 %v1584, %v1584
          %v1685 = vmul.f32 %v1585, %v1585
          %v1686 = vmul.f32 %v1586, %v1586
          %v1687 = vmul.f32 %v1587, %v1587
          %v1688 = vmul.f32 %v1588, %v1588
          %v1689 = vmul.f32 %v1589, %v1589
          %v1690 = vmul.f32 %v1590, %v1590
          %v1691 = vmul.f32 %v1591, %v1591
          %v1692 = vmul.f32 %v1592, %v1592
          %v1693 = vmul.f32 %v1593, %v1593
          %v1694 = vmul.f32 %v1594, %v1594
          %v1695 = vmul.f32 %v1595, %v1595
          %v1696 = vmul.f32 %v1596, %v1596
          %v1697 = vmul.f32 %v1597, %v1597
          %v1698 = vmul.f32 %v1598, %v1598
          %v1699 = vmul.f32 %v1599, %v1599
          %v1700 = vmul.f32 %v1600, %v1600
          %v1701 = vmul.f32 %v1601, %v1601
          %v1702 = vmul.f32 %v1602, %v1602
          %v1703 = vmul.f32 %v1603, %v1603
          %v1704 = vmul.f32 %v1604, %v1604
          %v1705 = vmul.f32 %v1605, %v1605
          %v1706 = vmul.f32 %v1606, %v1606
          %v1707 = vmul.f32 %v1607, %v1607
          %v1708 = vmul.f32 %v1608, %v1608
          %v1709 = vmul.f32 %v1609, %v1609
          %v1710 = vmul.f32 %v1610, %v1610
          %v1711 = vadd.f32 %v1679, %v1681
          %v1712 = vadd.f32 %v1711, %v1683
          %v1713 = vadd.f32 %v1712, %v1685
          %v1714 = vadd.f32 %v1713, %v1687
          %v1715 = vadd.f32 %v1714, %v1689
          %v1716 = vadd.f32 %v1715, %v1691
          %v1717 = vadd.f32 %v1716, %v1693
          %v1718 = vadd.f32 %v1717, %v1695
          %v1719 = vadd.f32 %v1718, %v1697
          %v1720 = vadd.f32 %v1719, %v1699
          %v1721 = vadd.f32 %v1720, %v1701
          %v1722 = vadd.f32 %v1721, %v1703
          %v1723 = vadd.f32 %v1722, %v1705
          %v1724 = vadd.f32 %v1723, %v1707
          %v1725 = vadd.f32 %v1724, %v1709
          %v1726 = vrot.slane %v1725, 4
          %v1727 = vadd.f32 %v1725, %v1726
          %v1728 = vrot.slane %v1727, 2
          %v1729 = vadd.f32 %v1727, %v1728
          %v1730 = vrot.slane %v1729, 1
          %v1731 = vadd.f32 %v1729, %v1730
          %v1732 = vadd.f32 %v1680, %v1682
          %v1733 = vadd.f32 %v1732, %v1684
          %v1734 = vadd.f32 %v1733, %v1686
          %v1735 = vadd.f32 %v1734, %v1688
          %v1736 = vadd.f32 %v1735, %v1690
          %v1737 = vadd.f32 %v1736, %v1692
          %v1738 = vadd.f32 %v1737, %v1694
          %v1739 = vadd.f32 %v1738, %v1696
          %v1740 = vadd.f32 %v1739, %v1698
          %v1741 = vadd.f32 %v1740, %v1700
          %v1742 = vadd.f32 %v1741, %v1702
          %v1743 = vadd.f32 %v1742, %v1704
          %v1744 = vadd.f32 %v1743, %v1706
          %v1745 = vadd.f32 %v1744, %v1708
          %v1746 = vadd.f32 %v1745, %v1710
          %v1747 = vrot.slane %v1746, 4
          %v1748 = vadd.f32 %v1746, %v1747
          %v1749 = vrot.slane %v1748, 2
          %v1750 = vadd.f32 %v1748, %v1749
          %v1751 = vrot.slane %v1750, 1
          %v1752 = vadd.f32 %v1750, %v1751
          %v1755 = vcombine.low %v1731, %v1752
          %v1757 = vunpack.c.l.s4 1966171168
          %v1758 = vunpack.c.0.s8 %v1757
          %v1759 = vlaneseq
          %v1760 = vshrl.u32 %v1759, 7
          %v1761 = vsub.s32 %v1758, %v1760
          %v1762 = vrot.slane %v1755, %v1761
          %v1764 = vunpack.c.l.s4 1966171168
          %v1765 = vunpack.c.0.s8 %v1764
          %v1766 = vlaneseq
          %v1767 = vshrl.u32 %v1766, 7
          %v1768 = vsub.s32 %v1765, %v1767
          %v1769 = vrot.slane %v1762, %v1768
          %v1771 = vadd.f32 %v1678, %v1769
          %1772 = vst.msk [vmem:[#allocation4] sm:$0x3] %vm1676, %v1771
        $region68: #{tpu_custom_call.1} parent=51 // pred_fallthru
          _
        %p1773 = scmp.eq.s32.totalorder %s32, 1
        // Predicated region
        $region73: #{tpu_custom_call.1} parent=51 // pred_check
          %p1774 = pneg %p1773
        $region74: #{tpu_custom_call.1} parent=51 // pred_check_branch
          %1776 = sbr.rel (%p1774) target = $region76
        $region75: #{tpu_custom_call.1} parent=51 // pred_region
          %v1777 = vld [vmem:[#allocation3] sm:$0x3]
          %v1778 = vmul.f32 %v1777, 0.005
          %v1779 = vld [vmem:[#allocation4] sm:$0x3]
          %v1780 = vmul.f32 %v1779, 0.005
          %v1781 = vmul.f32 %v1778, %v1778
          %v1782 = vsub.f32 %v1780, %v1781
          %v1783 = vmax.f32 %v1782, 0.0
          %v1784 = vld [vmem:[%s3] sm:$0x3]
          %v1785 = vadd.f32 %v1783, 1e-05
          %v1786 = vrsqrt.pop %v1785
          %v1787 = vmul.f32 %v1784, %v1786
          %v1788 = vld [vmem:[%s4] sm:$0x3]
          %v1789 = vmul.f32 %v1778, %v1787
          %v1790 = vsub.f32 %v1788, %v1789
          %s1791 = sshra.s32 %s432, 3
          %s1792 = sand.u32 %s432, 7
          %s1793 = smul.u32 %s1791, 2
          %s1794 = smul.addr %s1793, 8
          %s1795 = scalar_lea.vmem [#allocation2], %s1794
          %v1796 = vld [vmem:[%s1795] sm:$0xff]
          %v1797 = vld [vmem:[%s1795 + $0x8] sm:$0xff]
          %v1798 = vld [vmem:[%s1795 + $0x10] sm:$0xff]
          %v1799 = vld [vmem:[%s1795 + $0x18] sm:$0xff]
          %v1800 = vld [vmem:[%s1795 + $0x20] sm:$0xff]
          %v1801 = vld [vmem:[%s1795 + $0x28] sm:$0xff]
          %v1802 = vld [vmem:[%s1795 + $0x30] sm:$0xff]
          %v1803 = vld [vmem:[%s1795 + $0x38] sm:$0xff]
          %v1804 = vld [vmem:[%s1795 + $0x40] sm:$0xff]
          %v1805 = vld [vmem:[%s1795 + $0x48] sm:$0xff]
          %v1806 = vld [vmem:[%s1795 + $0x50] sm:$0xff]
          %v1807 = vld [vmem:[%s1795 + $0x58] sm:$0xff]
          %v1808 = vld [vmem:[%s1795 + $0x60] sm:$0xff]
          %v1809 = vld [vmem:[%s1795 + $0x68] sm:$0xff]
          %v1810 = vld [vmem:[%s1795 + $0x70] sm:$0xff]
          %v1811 = vld [vmem:[%s1795 + $0x78] sm:$0xff]
          %v1812 = vld [vmem:[%s1795 + $0x80] sm:$0xff]
          %v1813 = vld [vmem:[%s1795 + $0x88] sm:$0xff]
          %v1814 = vld [vmem:[%s1795 + $0x90] sm:$0xff]
          %v1815 = vld [vmem:[%s1795 + $0x98] sm:$0xff]
          %v1816 = vld [vmem:[%s1795 + $0xa0] sm:$0xff]
          %v1817 = vld [vmem:[%s1795 + $0xa8] sm:$0xff]
          %v1818 = vld [vmem:[%s1795 + $0xb0] sm:$0xff]
          %v1819 = vld [vmem:[%s1795 + $0xb8] sm:$0xff]
          %v1820 = vld [vmem:[%s1795 + $0xc0] sm:$0xff]
          %v1821 = vld [vmem:[%s1795 + $0xc8] sm:$0xff]
          %v1822 = vld [vmem:[%s1795 + $0xd0] sm:$0xff]
          %v1823 = vld [vmem:[%s1795 + $0xd8] sm:$0xff]
          %v1824 = vld [vmem:[%s1795 + $0xe0] sm:$0xff]
          %v1825 = vld [vmem:[%s1795 + $0xe8] sm:$0xff]
          %v1826 = vld [vmem:[%s1795 + $0xf0] sm:$0xff]
          %v1827 = vld [vmem:[%s1795 + $0xf8] sm:$0xff]
          %v1829 = vlaneseq
          %v1830 = vshrl.u32 %v1829, 7
          %v1831 = vsub.s32 0, %v1830
          %v1832 = vrot.slane %v1787, %v1831
          %v1833 = vlaneseq
          %v1834 = vshrl.u32 %v1833, 7
          %v1835 = vsub.s32 1, %v1834
          %v1836 = vrot.slane %v1787, %v1835
          %v1839 = vmul.f32 %v1796, %v1832
          %v1840 = vmul.f32 %v1797, %v1836
          %v1841 = vmul.f32 %v1798, %v1832
          %v1842 = vmul.f32 %v1799, %v1836
          %v1843 = vmul.f32 %v1800, %v1832
          %v1844 = vmul.f32 %v1801, %v1836
          %v1845 = vmul.f32 %v1802, %v1832
          %v1846 = vmul.f32 %v1803, %v1836
          %v1847 = vmul.f32 %v1804, %v1832
          %v1848 = vmul.f32 %v1805, %v1836
          %v1849 = vmul.f32 %v1806, %v1832
          %v1850 = vmul.f32 %v1807, %v1836
          %v1851 = vmul.f32 %v1808, %v1832
          %v1852 = vmul.f32 %v1809, %v1836
          %v1853 = vmul.f32 %v1810, %v1832
          %v1854 = vmul.f32 %v1811, %v1836
          %v1855 = vmul.f32 %v1812, %v1832
          %v1856 = vmul.f32 %v1813, %v1836
          %v1857 = vmul.f32 %v1814, %v1832
          %v1858 = vmul.f32 %v1815, %v1836
          %v1859 = vmul.f32 %v1816, %v1832
          %v1860 = vmul.f32 %v1817, %v1836
          %v1861 = vmul.f32 %v1818, %v1832
          %v1862 = vmul.f32 %v1819, %v1836
          %v1863 = vmul.f32 %v1820, %v1832
          %v1864 = vmul.f32 %v1821, %v1836
          %v1865 = vmul.f32 %v1822, %v1832
          %v1866 = vmul.f32 %v1823, %v1836
          %v1867 = vmul.f32 %v1824, %v1832
          %v1868 = vmul.f32 %v1825, %v1836
          %v1869 = vmul.f32 %v1826, %v1832
          %v1870 = vmul.f32 %v1827, %v1836
          %v1872 = vlaneseq
          %v1873 = vshrl.u32 %v1872, 7
          %v1874 = vsub.s32 0, %v1873
          %v1875 = vrot.slane %v1790, %v1874
          %v1876 = vlaneseq
          %v1877 = vshrl.u32 %v1876, 7
          %v1878 = vsub.s32 1, %v1877
          %v1879 = vrot.slane %v1790, %v1878
          %v1882 = vadd.f32 %v1839, %v1875
          %v1883 = vadd.f32 %v1840, %v1879
          %v1884 = vadd.f32 %v1841, %v1875
          %v1885 = vadd.f32 %v1842, %v1879
          %v1886 = vadd.f32 %v1843, %v1875
          %v1887 = vadd.f32 %v1844, %v1879
          %v1888 = vadd.f32 %v1845, %v1875
          %v1889 = vadd.f32 %v1846, %v1879
          %v1890 = vadd.f32 %v1847, %v1875
          %v1891 = vadd.f32 %v1848, %v1879
          %v1892 = vadd.f32 %v1849, %v1875
          %v1893 = vadd.f32 %v1850, %v1879
          %v1894 = vadd.f32 %v1851, %v1875
          %v1895 = vadd.f32 %v1852, %v1879
          %v1896 = vadd.f32 %v1853, %v1875
          %v1897 = vadd.f32 %v1854, %v1879
          %v1898 = vadd.f32 %v1855, %v1875
          %v1899 = vadd.f32 %v1856, %v1879
          %v1900 = vadd.f32 %v1857, %v1875
          %v1901 = vadd.f32 %v1858, %v1879
          %v1902 = vadd.f32 %v1859, %v1875
          %v1903 = vadd.f32 %v1860, %v1879
          %v1904 = vadd.f32 %v1861, %v1875
          %v1905 = vadd.f32 %v1862, %v1879
          %v1906 = vadd.f32 %v1863, %v1875
          %v1907 = vadd.f32 %v1864, %v1879
          %v1908 = vadd.f32 %v1865, %v1875
          %v1909 = vadd.f32 %v1866, %v1879
          %v1910 = vadd.f32 %v1867, %v1875
          %v1911 = vadd.f32 %v1868, %v1879
          %v1912 = vadd.f32 %v1869, %v1875
          %v1913 = vadd.f32 %v1870, %v1879
          %v1914 = vmax.f32 %v1882, 0.0
          %v1915 = vmax.f32 %v1883, 0.0
          %v1916 = vmax.f32 %v1884, 0.0
          %v1917 = vmax.f32 %v1885, 0.0
          %v1918 = vmax.f32 %v1886, 0.0
          %v1919 = vmax.f32 %v1887, 0.0
          %v1920 = vmax.f32 %v1888, 0.0
          %v1921 = vmax.f32 %v1889, 0.0
          %v1922 = vmax.f32 %v1890, 0.0
          %v1923 = vmax.f32 %v1891, 0.0
          %v1924 = vmax.f32 %v1892, 0.0
          %v1925 = vmax.f32 %v1893, 0.0
          %v1926 = vmax.f32 %v1894, 0.0
          %v1927 = vmax.f32 %v1895, 0.0
          %v1928 = vmax.f32 %v1896, 0.0
          %v1929 = vmax.f32 %v1897, 0.0
          %v1930 = vmax.f32 %v1898, 0.0
          %v1931 = vmax.f32 %v1899, 0.0
          %v1932 = vmax.f32 %v1900, 0.0
          %v1933 = vmax.f32 %v1901, 0.0
          %v1934 = vmax.f32 %v1902, 0.0
          %v1935 = vmax.f32 %v1903, 0.0
          %v1936 = vmax.f32 %v1904, 0.0
          %v1937 = vmax.f32 %v1905, 0.0
          %v1938 = vmax.f32 %v1906, 0.0
          %v1939 = vmax.f32 %v1907, 0.0
          %v1940 = vmax.f32 %v1908, 0.0
          %v1941 = vmax.f32 %v1909, 0.0
          %v1942 = vmax.f32 %v1910, 0.0
          %v1943 = vmax.f32 %v1911, 0.0
          %v1944 = vmax.f32 %v1912, 0.0
          %v1945 = vmax.f32 %v1913, 0.0
          %v1946 = vld [vmem:[%s379] sm:$0xff]
          %v1947 = vld [vmem:[%s379 + $0x8] sm:$0xff]
          %v1948 = vld [vmem:[%s379 + $0x10] sm:$0xff]
          %v1949 = vld [vmem:[%s379 + $0x18] sm:$0xff]
          %v1950 = vld [vmem:[%s379 + $0x20] sm:$0xff]
          %v1951 = vld [vmem:[%s379 + $0x28] sm:$0xff]
          %v1952 = vld [vmem:[%s379 + $0x30] sm:$0xff]
          %v1953 = vld [vmem:[%s379 + $0x38] sm:$0xff]
          %v1954 = vld [vmem:[%s379 + $0x40] sm:$0xff]
          %v1955 = vld [vmem:[%s379 + $0x48] sm:$0xff]
          %v1956 = vld [vmem:[%s379 + $0x50] sm:$0xff]
          %v1957 = vld [vmem:[%s379 + $0x58] sm:$0xff]
          %v1958 = vld [vmem:[%s379 + $0x60] sm:$0xff]
          %v1959 = vld [vmem:[%s379 + $0x68] sm:$0xff]
          %v1960 = vld [vmem:[%s379 + $0x70] sm:$0xff]
          %v1961 = vld [vmem:[%s379 + $0x78] sm:$0xff]
          %v1962 = vunpack.c.l.bf16 %v1946
          %v1963 = vunpack.c.h.bf16 %v1946
          %v1964 = vunpack.c.l.bf16 %v1947
          %v1965 = vunpack.c.h.bf16 %v1947
          %v1966 = vunpack.c.l.bf16 %v1948
          %v1967 = vunpack.c.h.bf16 %v1948
          %v1968 = vunpack.c.l.bf16 %v1949
          %v1969 = vunpack.c.h.bf16 %v1949
          %v1970 = vunpack.c.l.bf16 %v1950
          %v1971 = vunpack.c.h.bf16 %v1950
          %v1972 = vunpack.c.l.bf16 %v1951
          %v1973 = vunpack.c.h.bf16 %v1951
          %v1974 = vunpack.c.l.bf16 %v1952
          %v1975 = vunpack.c.h.bf16 %v1952
          %v1976 = vunpack.c.l.bf16 %v1953
          %v1977 = vunpack.c.h.bf16 %v1953
          %v1978 = vunpack.c.l.bf16 %v1954
          %v1979 = vunpack.c.h.bf16 %v1954
          %v1980 = vunpack.c.l.bf16 %v1955
          %v1981 = vunpack.c.h.bf16 %v1955
          %v1982 = vunpack.c.l.bf16 %v1956
          %v1983 = vunpack.c.h.bf16 %v1956
          %v1984 = vunpack.c.l.bf16 %v1957
          %v1985 = vunpack.c.h.bf16 %v1957
          %v1986 = vunpack.c.l.bf16 %v1958
          %v1987 = vunpack.c.h.bf16 %v1958
          %v1988 = vunpack.c.l.bf16 %v1959
          %v1989 = vunpack.c.h.bf16 %v1959
          %v1990 = vunpack.c.l.bf16 %v1960
          %v1991 = vunpack.c.h.bf16 %v1960
          %v1992 = vunpack.c.l.bf16 %v1961
          %v1993 = vunpack.c.h.bf16 %v1961
          %v1994 = vmul.f32 %v1914, %v1962
          %v1995 = vmul.f32 %v1915, %v1963
          %v1996 = vmul.f32 %v1916, %v1964
          %v1997 = vmul.f32 %v1917, %v1965
          %v1998 = vmul.f32 %v1918, %v1966
          %v1999 = vmul.f32 %v1919, %v1967
          %v2000 = vmul.f32 %v1920, %v1968
          %v2001 = vmul.f32 %v1921, %v1969
          %v2002 = vmul.f32 %v1922, %v1970
          %v2003 = vmul.f32 %v1923, %v1971
          %v2004 = vmul.f32 %v1924, %v1972
          %v2005 = vmul.f32 %v1925, %v1973
          %v2006 = vmul.f32 %v1926, %v1974
          %v2007 = vmul.f32 %v1927, %v1975
          %v2008 = vmul.f32 %v1928, %v1976
          %v2009 = vmul.f32 %v1929, %v1977
          %v2010 = vmul.f32 %v1930, %v1978
          %v2011 = vmul.f32 %v1931, %v1979
          %v2012 = vmul.f32 %v1932, %v1980
          %v2013 = vmul.f32 %v1933, %v1981
          %v2014 = vmul.f32 %v1934, %v1982
          %v2015 = vmul.f32 %v1935, %v1983
          %v2016 = vmul.f32 %v1936, %v1984
          %v2017 = vmul.f32 %v1937, %v1985
          %v2018 = vmul.f32 %v1938, %v1986
          %v2019 = vmul.f32 %v1939, %v1987
          %v2020 = vmul.f32 %v1940, %v1988
          %v2021 = vmul.f32 %v1941, %v1989
          %v2022 = vmul.f32 %v1942, %v1990
          %v2023 = vmul.f32 %v1943, %v1991
          %v2024 = vmul.f32 %v1944, %v1992
          %v2025 = vmul.f32 %v1945, %v1993
          %v2026 = vld [vmem:[%s6] sm:$0x3]
          %v2027 = vld [vmem:[#allocation5] sm:$0x1]
          %2029 = vset.pattern.permute.xlu0 0
          %2030 = vperm.xlu0 %2029, %v2027
          %v2031 = vpop.permute.xlu0 %2030
          %v2033 = vlaneseq
          %v2034 = vshrl.u32 %v2033, 7
          %v2035 = vsub.s32 0, %v2034
          %v2036 = vrot.slane %v2031, %v2035
          %v2038 = vlaneseq
          %v2039 = vshrl.u32 %v2038, 7
          %v2040 = vsub.s32 0, %v2039
          %v2041 = vrot.slane %v2026, %v2040
          %v2042 = vlaneseq
          %v2043 = vshrl.u32 %v2042, 7
          %v2044 = vsub.s32 1, %v2043
          %v2045 = vrot.slane %v2026, %v2044
          %2048 = vmatprep.subr.mxu0 %v1995
          %2049 = vmatpush1.xpose.msra.mxu0 %v1994
          %2050 = vmatprep.subr.mxu0 %v1997
          %2051 = vmatpush1.xpose.msra.mxu0 %v1996
          %2052 = vmatprep.subr.mxu0 %v1999
          %2053 = vmatpush1.xpose.msra.mxu0 %v1998
          %2054 = vmatprep.subr.mxu0 %v2001
          %2055 = vmatpush1.xpose.msra.mxu0 %v2000
          %2056 = vmatprep.subr.mxu0 %v2003
          %2057 = vmatpush1.xpose.msra.mxu0 %v2002
          %2058 = vmatprep.subr.mxu0 %v2005
          %2059 = vmatpush1.xpose.msra.mxu0 %v2004
          %2060 = vmatprep.subr.mxu0 %v2007
          %2061 = vmatpush1.xpose.msra.mxu0 %v2006
          %2062 = vmatprep.subr.mxu0 %v2009
          %2063 = vmatpush1.xpose.msra.mxu0 %v2008
          %2064 = vmatprep.subr.mxu0 %v2011
          %2065 = vmatpush1.xpose.msra.mxu0 %v2010
          %2066 = vmatprep.subr.mxu0 %v2013
          %2067 = vmatpush1.xpose.msra.mxu0 %v2012
          %2068 = vmatprep.subr.mxu0 %v2015
          %2069 = vmatpush1.xpose.msra.mxu0 %v2014
          %2070 = vmatprep.subr.mxu0 %v2017
          %2071 = vmatpush1.xpose.msra.mxu0 %v2016
          %2072 = vmatprep.subr.mxu0 %v2019
          %2073 = vmatpush1.xpose.msra.mxu0 %v2018
          %2074 = vmatprep.subr.mxu0 %v2021
          %2075 = vmatpush1.xpose.msra.mxu0 %v2020
          %2076 = vmatprep.subr.mxu0 %v2023
          %2077 = vmatpush1.xpose.msra.mxu0 %v2022
          %2078 = vmatprep.subr.mxu0 %v2025
          %2079 = vmatpush1.xpose.msra.mxu0 %v2024
          %2080 = vmatprep.subr.mxu0 0.0
          %2081 = vmatpush1.xpose.msra.mxu0 0.0
          %2082 = vmatprep.subr.mxu0 0.0
          %2083 = vmatpush1.xpose.msra.mxu0 0.0
          %2084 = vmatprep.subr.mxu0 0.0
          %2085 = vmatpush1.xpose.msra.mxu0 0.0
          %2086 = vmatprep.subr.mxu0 0.0
          %2087 = vmatpush1.xpose.msra.mxu0 0.0
          %2088 = vmatprep.subr.mxu0 0.0
          %2089 = vmatpush1.xpose.msra.mxu0 0.0
          %2090 = vmatprep.subr.mxu0 0.0
          %2091 = vmatpush1.xpose.msra.mxu0 0.0
          %2092 = vmatprep.subr.mxu0 0.0
          %2093 = vmatpush1.xpose.msra.mxu0 0.0
          %2094 = vmatprep.subr.mxu0 0.0
          %2095 = vmatpush1.xpose.msra.mxu0 0.0
          %2096 = vmatprep.subr.mxu0 0.0
          %2097 = vmatpush1.xpose.msra.mxu0 0.0
          %2098 = vmatprep.subr.mxu0 0.0
          %2099 = vmatpush1.xpose.msra.mxu0 0.0
          %2100 = vmatprep.subr.mxu0 0.0
          %2101 = vmatpush1.xpose.msra.mxu0 0.0
          %2102 = vmatprep.subr.mxu0 0.0
          %2103 = vmatpush1.xpose.msra.mxu0 0.0
          %2104 = vmatprep.subr.mxu0 0.0
          %2105 = vmatpush1.xpose.msra.mxu0 0.0
          %2106 = vmatprep.subr.mxu0 0.0
          %2107 = vmatpush1.xpose.msra.mxu0 0.0
          %2108 = vmatprep.subr.mxu0 0.0
          %2109 = vmatpush1.xpose.msra.mxu0 0.0
          %2110 = vmatprep.subr.mxu0 0.0
          %2111 = vmatpush1.xpose.msra.mxu0 0.0
          %2112 = vmatprep.mubr.f32.mxu0 %v2045
          %2113 = vmatmul.mubr.f32.gmra.mrb[0].mxu0 %v2041
          %v2114 = vpop.f32.mrb[0].mxu0
          %v2115 = vadd.f32 %v2036, %v2114
          %v2116 = vpop.f32.mrb[0].mxu0
          %2117 = vdwg.mxu0
          %v2118 = vsub.f32 0.0, %v2115
          %v2119 = vmul.f32 %v2118, 1.442695
          %v2120 = vpow.pop %v2119
          %v2121 = vadd.f32 %v2120, 1.0
          %v2122 = vrcp.pop %v2121
          %v2123 = vmul.f32 1.0, %v2122
          %2124 = vst [vmem:[%s415] sm:$0x1] %v2123
        $region76: #{tpu_custom_call.1} parent=51 // pred_fallthru
          _
        %s2125 = sand.u32 %s234, 1
        %s2126 = scalar_lea.sflag [#allocation8], %s2125
        %s2127 = sand.u32 %s234, 1
        %s2128 = scalar_lea.vmem [#allocation12], %s2127
        // Predicated region
        $region77: #{tpu_custom_call.1} parent=51 // pred_check
          %p2129 = pneg %p244
        $region78: #{tpu_custom_call.1} parent=51 // pred_check_branch
          %2131 = sbr.rel (%p2129) target = $region80
        $region79: #{tpu_custom_call.1} parent=51 // pred_region
          %s2132 = smul.u32 %s33, %s32
          %s2134 = ssub.s32 16, 16
          %2135 = vsyncadd %s2126, %s2134
          %s2136 = smul.addr %s2132, 16
          %s2137 = scalar_lea.hbm %s8, %s2136
          %s2139 = sshll.u32 %s2128, 4
          %s2140 = int_to_ptr.vmem [resolvable:$true] %s2139
          %2142 = dma.vmem_to_hbm [thread:$0]  %s2140, 16, %s2137, %s2126
        $region80: #{tpu_custom_call.1} parent=51 // pred_fallthru
          _
      $region52: #{tpu_custom_call.1} parent=5 // pred_fallthru
        _
      %p2143 = scmp.le.s32.totalorder 2, %s23
      // Predicated region
      $region81: #{tpu_custom_call.1} parent=5 // pred_check
        %p2144 = pneg %p2143
      $region82: #{tpu_custom_call.1} parent=5 // pred_check_branch
        %2146 = sbr.rel (%p2144) target = $region84
      $region83: #{tpu_custom_call.1} parent=5 // pred_region
        %s2147 = ssub.s32 %s23, 2
        // Predicated region
        $region85: #{tpu_custom_call.1} parent=83 // pred_check
          %p2148 = pneg %p250
        $region86: #{tpu_custom_call.1} parent=83 // pred_check_branch
          %2150 = sbr.rel (%p2148) target = $region88
        $region87: #{tpu_custom_call.1} parent=83 // pred_region
          %s2151 = sand.u32 %s235, 1
          %s2152 = scalar_lea.sflag [#allocation8], %s2151
          %s2153 = sand.u32 %s235, 1
          %s2154 = scalar_lea.vmem [#allocation12], %s2153
          %2155 = dma.done %s2152, 16
        $region88: #{tpu_custom_call.1} parent=83 // pred_fallthru
          _
      $region84: #{tpu_custom_call.1} parent=5 // pred_fallthru
        _
    $region6: #{tpu_custom_call.1} parent=1 // loop_footer
      %s27 = sadd.s32 1, %s23
    $region7: #{tpu_custom_call.1} parent=1 // loop_footer_branch
      %22 = sbr.rel target = $region3
    $region8: #{tpu_custom_call.1} parent=1 // loop_exit
      _
    %2156 = vsyncpa [#allocation7], 1
    %s2157 = scalar_lea.sflag [#allocation7], 1
    %2158 = vsyncpa %s2157, 1
    %2159 = vsyncpa [#allocation10], 1
    %2160 = vsyncpa [#allocation8], 1
    %s2161 = scalar_lea.sflag [#allocation8], 1
    %2162 = vsyncpa %s2161, 1

</llo_original>
